<compile_context>
chip_gen: v7x
topology: tpu7x:2x2x1
jax: 0.10.0
libtpu: 0.0.40
codegen_flags: <defaults>
</compile_context>

<pallas_src>
import math
import functools

import jax
import jax.numpy as jnp
import numpy as np
from jax.experimental import pallas as pl
from jax.experimental.pallas import tpu as pltpu


def _layernorm(h, g, b, eps=1e-5):
    mu = jnp.mean(h, axis=-1, keepdims=True)
    var = jnp.mean((h - mu) ** 2, axis=-1, keepdims=True)
    return (h - mu) * jax.lax.rsqrt(var + eps) * g + b


def expert_block_kernel(x_ref, tok_ref, wq, bq, wk, bk, wv, bv, wp, bp,
                        g1, be1, w1, b1, w2, b2, g2, be2,
                        o_ref, xcat_ref, *, n_heads):
    """Fused expert_Block forward for one batch element.

    x_ref block  : (1, T, C)  real tokens of this batch element (f32).
    tok_ref      : (L, C)     shared task token (f32, grid-invariant).
    Matmul weight refs (wq/wk/wv/wp/w1/w2) are bf16; biases / LN params f32.
    xcat_ref     : VMEM scratch (T+L, C) f32 — the concatenated sequence is
                   assembled on-chip instead of materializing it in HBM.
    """
    bf16 = jnp.bfloat16
    f32 = jnp.float32

    T_in = x_ref.shape[1]                      # number of real (output) rows
    L = tok_ref.shape[0]

    # ---- assemble [x ; task_token] in VMEM (no wrapper-side HBM concat) ----
    xcat_ref[pl.ds(0, T_in), :] = x_ref[0]
    xcat_ref[pl.ds(T_in, L), :] = tok_ref[...]
    x = xcat_ref[...]                          # (Tt, C) f32
    Tt, C = x.shape
    D = C // n_heads
    scale = 1.0 / math.sqrt(D)

    # ---- MaskedCausalAttention (bf16 MXU operands, f32 accumulation) ----
    xb = x.astype(bf16)
    q = jnp.dot(xb, wq[...], preferred_element_type=f32) + bq[...]
    k = jnp.dot(xb, wk[...], preferred_element_type=f32) + bk[...]
    v = jnp.dot(xb, wv[...], preferred_element_type=f32) + bv[...]
    q = q * scale                              # fold 1/sqrt(D) once into q (C-wide),
                                               # instead of a (T,T) multiply per head
    qb = q.astype(bf16)
    kb = k.astype(bf16)
    vb = v.astype(bf16)
    wp_full = wp[...]                          # (C, C) bf16

    row = jax.lax.broadcasted_iota(jnp.int32, (Tt, Tt), 0)
    col = jax.lax.broadcasted_iota(jnp.int32, (Tt, Tt), 1)
    causal = col <= row
    neg = jnp.float32(-1e30)                   # large finite mask value (robust vs -inf)

    # contract the head dim of q with the head dim of k (no explicit k.T)
    contract_last = (((1,), (1,)), ((), ()))

    # Accumulate the output projection per head:
    #   att @ Wp == sum_h att_h @ Wp[h*D:(h+1)*D, :]
    # This removes the lane-axis concatenate of head outputs entirely.
    att_out = jnp.zeros((Tt, C), f32)
    for h in range(n_heads):                   # static unrolled loop over heads
        sl = slice(h * D, (h + 1) * D)
        s = jax.lax.dot_general(qb[:, sl], kb[:, sl], contract_last,
                                preferred_element_type=f32)        # (Tt, Tt)
        s = jnp.where(causal, s, neg)
        m = jnp.max(s, axis=-1, keepdims=True)
        e = jnp.exp(s - m)
        l = jnp.sum(e, axis=-1, keepdims=True)
        p = e * pl.reciprocal(l, approx=True)  # divide goes to the EUP slot
        head = jnp.dot(p.astype(bf16), vb[:, sl],
                       preferred_element_type=f32)                 # (Tt, D)
        att_out = att_out + jnp.dot(head.astype(bf16), wp_full[sl, :],
                                    preferred_element_type=f32)
    att_out = att_out + bp[...]
    # TODO(synk): att_drop / proj_drop / MLP dropout omitted (eval-mode semantics).

    # ---- residual + LN1 (f32 elementwise) ----
    x1 = _layernorm(x + att_out, g1[...], be1[...])

    # ---- MLP: Linear -> exact GELU -> Linear (bf16 MXU inputs, f32 accumulate) ----
    h1 = jnp.dot(x1.astype(bf16), w1[...], preferred_element_type=f32) + b1[...]
    h1 = 0.5 * h1 * (1.0 + jax.lax.erf(h1 * (1.0 / math.sqrt(2.0))))   # exact GELU
    h2 = jnp.dot(h1.astype(bf16), w2[...], preferred_element_type=f32) + b2[...]

    # ---- residual + LN2 ----
    x2 = _layernorm(x1 + h2, g2[...], be2[...])

    # Only the first T rows are the module's output (task-token rows dropped):
    # writing just those saves L/(T+L) of the HBM writeback and the wrapper slice.
    o_ref[0] = x2[:T_in].astype(o_ref.dtype)


_PARAM_ORDER = ["wq", "bq", "wk", "bk", "wv", "bv", "wp", "bp",
                "g1", "be1", "w1", "b1", "w2", "b2", "g2", "be2"]
_MATMUL_WEIGHTS = {"wq", "wk", "wv", "wp", "w1", "w2"}


def expert_block_forward(x, task_id, params, *, n_heads):
    B, T, C = x.shape
    token = params["task_tokens"][task_id]                 # (L, C)
    L = token.shape[0]
    Tt = T + L

    # x and the task token are passed separately; the concat happens in VMEM
    # inside the kernel (no extra HBM read+write of the whole activation).
    args = [x, token]
    in_specs = [pl.BlockSpec((1, T, C), lambda b: (b, 0, 0)),
                pl.BlockSpec((L, C), lambda b: (0, 0))]
    for name in _PARAM_ORDER:
        a = params[name]
        if name in _MATMUL_WEIGHTS:
            a = a.astype(jnp.bfloat16)     # bf16 MXU inputs (halves weight VMEM too)
        args.append(a)
        in_specs.append(pl.BlockSpec(a.shape, lambda b: (0, 0)))

    # TODO(synk): for large C / long sequences on v7x (64 MiB VMEM, 2 TCs), add a
    # query-row grid axis (flash-style) and pipeline_mode=pl.Buffered(1) on the
    # grid-invariant weight specs; unnecessary at these toy shapes.
    out = pl.pallas_call(
        functools.partial(expert_block_kernel, n_heads=n_heads),
        out_shape=jax.ShapeDtypeStruct((B, T, C), x.dtype),   # only the T kept rows
        grid_spec=pltpu.PrefetchScalarGridSpec(
            num_scalar_prefetch=0,
            grid=(B,),
            in_specs=in_specs,
            out_specs=pl.BlockSpec((1, T, C), lambda b: (b, 0, 0)),
            scratch_shapes=[pltpu.VMEM((Tt, C), jnp.float32)],
        ),
        compiler_params=pltpu.CompilerParams(
            dimension_semantics=("parallel",),
            vmem_limit_bytes=64 * 1024 * 1024),
    )(*args)
    return out


def init_params(key, hidden_dim, token_length, sum_tasks):
    C = hidden_dim
    ks = jax.random.split(key, 8)

    def linear(k, din, dout):
        k1, k2 = jax.random.split(k)
        bound = 1.0 / math.sqrt(din)
        W = jax.random.uniform(k1, (dout, din), jnp.float32, -bound, bound)
        b = jax.random.uniform(k2, (dout,), jnp.float32, -bound, bound)
        return W.T, b.reshape(1, dout)     # pre-transposed (in,out), bias (1,out)

    wq, bq = linear(ks[0], C, C)
    wk, bk = linear(ks[1], C, C)
    wv, bv = linear(ks[2], C, C)
    wp, bp = linear(ks[3], C, C)
    w1, b1 = linear(ks[4], C, 4 * C)
    w2, b2 = linear(ks[5], 4 * C, C)

    tok_keys = jax.random.split(ks[6], sum_tasks)
    task_tokens = [jax.random.normal(tk, (token_length, C), jnp.float32)
                   for tk in tok_keys]

    return dict(
        wq=wq, bq=bq, wk=wk, bk=bk, wv=wv, bv=bv, wp=wp, bp=bp,
        g1=jnp.ones((1, C), jnp.float32), be1=jnp.zeros((1, C), jnp.float32),
        w1=w1, b1=b1, w2=w2, b2=b2,
        g2=jnp.ones((1, C), jnp.float32), be2=jnp.zeros((1, C), jnp.float32),
        task_tokens=task_tokens,
    )


def reference_forward(x, task_id, p, *, n_heads):
    """Pure-JAX reference matching the PyTorch module (eval mode).

    Mirrors the kernel's mixed-precision policy (bf16 matmul operands with f32
    accumulation); softmax / LayerNorm / GELU stay in f32 like the module.
    """
    bf16 = jnp.bfloat16

    def mm(a, w):
        return jnp.dot(a.astype(bf16), w.astype(bf16),
                       preferred_element_type=jnp.float32)

    B, T, C = x.shape
    token = p["task_tokens"][task_id]
    L = token.shape[0]
    xc = jnp.concatenate([x, jnp.broadcast_to(token[None], (B, L, C))], axis=1)
    Tt = T + L
    N, D = n_heads, C // n_heads

    def attn(h):
        q = (mm(h, p["wq"]) + p["bq"]).reshape(B, Tt, N, D).transpose(0, 2, 1, 3)
        k = (mm(h, p["wk"]) + p["bk"]).reshape(B, Tt, N, D).transpose(0, 2, 1, 3)
        v = (mm(h, p["wv"]) + p["bv"]).reshape(B, Tt, N, D).transpose(0, 2, 1, 3)
        s = jnp.einsum('bntd,bnsd->bnts', q.astype(bf16), k.astype(bf16),
                       preferred_element_type=jnp.float32) / math.sqrt(D)
        mask = jnp.tril(jnp.ones((Tt, Tt), bool))
        s = jnp.where(mask, s, -jnp.inf)
        a = jax.nn.softmax(s, axis=-1)
        o = jnp.einsum('bnts,bnsd->bntd', a.astype(bf16), v.astype(bf16),
                       preferred_element_type=jnp.float32)
        o = o.transpose(0, 2, 1, 3).reshape(B, Tt, C)
        return mm(o, p["wp"]) + p["bp"]

    def ln(h, g, b):
        mu = h.mean(-1, keepdims=True)
        var = ((h - mu) ** 2).mean(-1, keepdims=True)
        return (h - mu) / jnp.sqrt(var + 1e-5) * g + b

    h = xc + attn(xc)
    h = ln(h, p["g1"], p["be1"])
    m = mm(h, p["w1"]) + p["b1"]
    m = 0.5 * m * (1.0 + jax.lax.erf(m / math.sqrt(2.0)))
    m = mm(m, p["w2"]) + p["b2"]
    h = ln(h + m, p["g2"], p["be2"])
    return h[:, :T]


if __name__ == "__main__":
    B, T, hidden_dim, n_heads = 2, 8, 32, 2
    token_length, sum_tasks = 20, 3
    task_id = 1

    key = jax.random.PRNGKey(0)
    kx, kp = jax.random.split(key)
    x = jax.random.normal(kx, (B, T, hidden_dim), jnp.float32)
    params = init_params(kp, hidden_dim, token_length, sum_tasks)

    out = expert_block_forward(x, task_id, params, n_heads=n_heads)
    out = jax.block_until_ready(out)

    ref = reference_forward(x, task_id, params, n_heads=n_heads)
    np.testing.assert_allclose(np.asarray(out), np.asarray(ref),
                               atol=1e-2, rtol=1e-2)
    print("KERNEL_OK")
</pallas_src>

<mosaic_0001>
module attributes {stable_mosaic.version = 11 : i64} {
  func.func @expert_block_kernel(%arg0: i32, %arg1: memref<1x8x32xf32, #tpu.memory_space<vmem>>, %arg2: memref<20x32xf32, #tpu.memory_space<vmem>>, %arg3: memref<32x32xbf16, #tpu.memory_space<vmem>>, %arg4: memref<1x32xf32, #tpu.memory_space<vmem>>, %arg5: memref<32x32xbf16, #tpu.memory_space<vmem>>, %arg6: memref<1x32xf32, #tpu.memory_space<vmem>>, %arg7: memref<32x32xbf16, #tpu.memory_space<vmem>>, %arg8: memref<1x32xf32, #tpu.memory_space<vmem>>, %arg9: memref<32x32xbf16, #tpu.memory_space<vmem>>, %arg10: memref<1x32xf32, #tpu.memory_space<vmem>>, %arg11: memref<1x32xf32, #tpu.memory_space<vmem>>, %arg12: memref<1x32xf32, #tpu.memory_space<vmem>>, %arg13: memref<32x128xbf16, #tpu.memory_space<vmem>>, %arg14: memref<1x128xf32, #tpu.memory_space<vmem>>, %arg15: memref<128x32xbf16, #tpu.memory_space<vmem>>, %arg16: memref<1x32xf32, #tpu.memory_space<vmem>>, %arg17: memref<1x32xf32, #tpu.memory_space<vmem>>, %arg18: memref<1x32xf32, #tpu.memory_space<vmem>>, %arg19: memref<1x8x32xf32, #tpu.memory_space<vmem>>, %arg20: memref<28x32xf32, #tpu.memory_space<vmem>>) attributes {dimension_semantics = [#tpu.dimension_semantics<parallel>], iteration_bounds = array<i64: 2>, scalar_prefetch = 0 : i64, scratch_operands = 1 : i64, tpu.core_type = #tpu.core_type<tc>, window_params = [{transform_indices = @transform_0, window_bounds = array<i64: 1, 8, 32>}, {pipeline_mode = #tpu.pipeline_mode<synchronous>, transform_indices = @transform_1, window_bounds = array<i64: 20, 32>}, {pipeline_mode = #tpu.pipeline_mode<synchronous>, transform_indices = @transform_2, window_bounds = array<i64: 32, 32>}, {pipeline_mode = #tpu.pipeline_mode<synchronous>, transform_indices = @transform_3, window_bounds = array<i64: 1, 32>}, {pipeline_mode = #tpu.pipeline_mode<synchronous>, transform_indices = @transform_4, window_bounds = array<i64: 32, 32>}, {pipeline_mode = #tpu.pipeline_mode<synchronous>, transform_indices = @transform_5, window_bounds = array<i64: 1, 32>}, {pipeline_mode = #tpu.pipeline_mode<synchronous>, transform_indices = @transform_6, window_bounds = array<i64: 32, 32>}, {pipeline_mode = #tpu.pipeline_mode<synchronous>, transform_indices = @transform_7, window_bounds = array<i64: 1, 32>}, {pipeline_mode = #tpu.pipeline_mode<synchronous>, transform_indices = @transform_8, window_bounds = array<i64: 32, 32>}, {pipeline_mode = #tpu.pipeline_mode<synchronous>, transform_indices = @transform_9, window_bounds = array<i64: 1, 32>}, {pipeline_mode = #tpu.pipeline_mode<synchronous>, transform_indices = @transform_10, window_bounds = array<i64: 1, 32>}, {pipeline_mode = #tpu.pipeline_mode<synchronous>, transform_indices = @transform_11, window_bounds = array<i64: 1, 32>}, {pipeline_mode = #tpu.pipeline_mode<synchronous>, transform_indices = @transform_12, window_bounds = array<i64: 32, 128>}, {pipeline_mode = #tpu.pipeline_mode<synchronous>, transform_indices = @transform_13, window_bounds = array<i64: 1, 128>}, {pipeline_mode = #tpu.pipeline_mode<synchronous>, transform_indices = @transform_14, window_bounds = array<i64: 128, 32>}, {pipeline_mode = #tpu.pipeline_mode<synchronous>, transform_indices = @transform_15, window_bounds = array<i64: 1, 32>}, {pipeline_mode = #tpu.pipeline_mode<synchronous>, transform_indices = @transform_16, window_bounds = array<i64: 1, 32>}, {pipeline_mode = #tpu.pipeline_mode<synchronous>, transform_indices = @transform_17, window_bounds = array<i64: 1, 32>}, {transform_indices = @transform_18, window_bounds = array<i64: 1, 8, 32>}]} {
    %c0 = arith.constant 0 : index
    %c0_0 = arith.constant 0 : index
    %c0_1 = arith.constant 0 : index
    %0 = vector.load %arg1[%c0, %c0_0, %c0_1] : memref<1x8x32xf32, #tpu.memory_space<vmem>>, vector<1x8x32xf32>
    %1 = vector.shape_cast %0 : vector<1x8x32xf32> to vector<8x32xf32>
    %c0_2 = arith.constant 0 : index
    %c0_3 = arith.constant 0 : index
    %2 = vector.load %arg20[%c0_2, %c0_3] : memref<28x32xf32, #tpu.memory_space<vmem>>, vector<8x32xf32>
    tpu.vector_store %arg20[%c0_2, %c0_3], %1 {strides = array<i32>} : memref<28x32xf32, #tpu.memory_space<vmem>>, vector<8x32xf32>,
    %c0_4 = arith.constant 0 : index
    %c0_5 = arith.constant 0 : index
    %3 = vector.load %arg2[%c0_4, %c0_5] : memref<20x32xf32, #tpu.memory_space<vmem>>, vector<20x32xf32>
    %c8 = arith.constant 8 : index
    %c0_6 = arith.constant 0 : index
    %4 = vector.load %arg20[%c8, %c0_6] : memref<28x32xf32, #tpu.memory_space<vmem>>, vector<20x32xf32>
    tpu.vector_store %arg20[%c8, %c0_6], %3 {strides = array<i32>} : memref<28x32xf32, #tpu.memory_space<vmem>>, vector<20x32xf32>,
    %c0_7 = arith.constant 0 : index
    %c0_8 = arith.constant 0 : index
    %5 = vector.load %arg20[%c0_7, %c0_8] : memref<28x32xf32, #tpu.memory_space<vmem>>, vector<28x32xf32>
    %6 = arith.truncf %5 : vector<28x32xf32> to vector<28x32xbf16>
    %c0_9 = arith.constant 0 : index
    %c0_10 = arith.constant 0 : index
    %7 = vector.load %arg3[%c0_9, %c0_10] : memref<32x32xbf16, #tpu.memory_space<vmem>>, vector<32x32xbf16>
    %cst = arith.constant dense<0.000000e+00> : vector<28x32xf32>
    %8 = tpu.matmul %6, %7, %cst {dimension_numbers = #tpu.dot_dimension_numbers<[1], [0], [0], [1], [0, 0, 1, 1], [], []>} : vector<28x32xbf16>, vector<32x32xbf16>, vector<28x32xf32> -> vector<28x32xf32>
    %c0_11 = arith.constant 0 : index
    %c0_12 = arith.constant 0 : index
    %9 = vector.load %arg4[%c0_11, %c0_12] : memref<1x32xf32, #tpu.memory_space<vmem>>, vector<1x32xf32>
    %10 = vector.broadcast %9 : vector<1x32xf32> to vector<28x32xf32>
    %11 = arith.addf %8, %10 : vector<28x32xf32>
    %c0_13 = arith.constant 0 : index
    %c0_14 = arith.constant 0 : index
    %12 = vector.load %arg5[%c0_13, %c0_14] : memref<32x32xbf16, #tpu.memory_space<vmem>>, vector<32x32xbf16>
    %cst_15 = arith.constant dense<0.000000e+00> : vector<28x32xf32>
    %13 = tpu.matmul %6, %12, %cst_15 {dimension_numbers = #tpu.dot_dimension_numbers<[1], [0], [0], [1], [0, 0, 1, 1], [], []>} : vector<28x32xbf16>, vector<32x32xbf16>, vector<28x32xf32> -> vector<28x32xf32>
    %c0_16 = arith.constant 0 : index
    %c0_17 = arith.constant 0 : index
    %14 = vector.load %arg6[%c0_16, %c0_17] : memref<1x32xf32, #tpu.memory_space<vmem>>, vector<1x32xf32>
    %15 = vector.broadcast %14 : vector<1x32xf32> to vector<28x32xf32>
    %16 = arith.addf %13, %15 : vector<28x32xf32>
    %c0_18 = arith.constant 0 : index
    %c0_19 = arith.constant 0 : index
    %17 = vector.load %arg7[%c0_18, %c0_19] : memref<32x32xbf16, #tpu.memory_space<vmem>>, vector<32x32xbf16>
    %cst_20 = arith.constant dense<0.000000e+00> : vector<28x32xf32>
    %18 = tpu.matmul %6, %17, %cst_20 {dimension_numbers = #tpu.dot_dimension_numbers<[1], [0], [0], [1], [0, 0, 1, 1], [], []>} : vector<28x32xbf16>, vector<32x32xbf16>, vector<28x32xf32> -> vector<28x32xf32>
    %c0_21 = arith.constant 0 : index
    %c0_22 = arith.constant 0 : index
    %19 = vector.load %arg8[%c0_21, %c0_22] : memref<1x32xf32, #tpu.memory_space<vmem>>, vector<1x32xf32>
    %20 = vector.broadcast %19 : vector<1x32xf32> to vector<28x32xf32>
    %21 = arith.addf %18, %20 : vector<28x32xf32>
    %cst_23 = arith.constant 2.500000e-01 : f32
    %22 = vector.broadcast %cst_23 : f32 to vector<28x32xf32>
    %23 = arith.mulf %11, %22 : vector<28x32xf32>
    %24 = arith.truncf %23 : vector<28x32xf32> to vector<28x32xbf16>
    %25 = arith.truncf %16 : vector<28x32xf32> to vector<28x32xbf16>
    %26 = arith.truncf %21 : vector<28x32xf32> to vector<28x32xbf16>
    %c0_24 = arith.constant 0 : index
    %c0_25 = arith.constant 0 : index
    %27 = vector.load %arg9[%c0_24, %c0_25] : memref<32x32xbf16, #tpu.memory_space<vmem>>, vector<32x32xbf16>
    %28 = tpu.iota {dimensions = array<i32: 0>} : vector<28x28xi32>
    %29 = tpu.iota {dimensions = array<i32: 1>} : vector<28x28xi32>
    %30 = arith.cmpi sle, %29, %28 : vector<28x28xi32>
    %cst_26 = arith.constant 0.000000e+00 : f32
    %31 = vector.broadcast %cst_26 : f32 to vector<28x32xf32>
    %32 = vector.extract_strided_slice %24 {offsets = [0, 0], sizes = [28, 16], strides = [1, 1]} : vector<28x32xbf16> to vector<28x16xbf16>
    %33 = vector.extract_strided_slice %25 {offsets = [0, 0], sizes = [28, 16], strides = [1, 1]} : vector<28x32xbf16> to vector<28x16xbf16>
    %cst_27 = arith.constant dense<0.000000e+00> : vector<28x28xf32>
    %34 = tpu.matmul %32, %33, %cst_27 {dimension_numbers = #tpu.dot_dimension_numbers<[1], [1], [0], [0], [0, 0, 1, 0], [], []>} : vector<28x16xbf16>, vector<28x16xbf16>, vector<28x28xf32> -> vector<28x28xf32>
    %cst_28 = arith.constant -1.000000e+30 : f32
    %35 = vector.broadcast %cst_28 : f32 to vector<28x28xf32>
    %36 = arith.select %30, %34, %35 : vector<28x28xi1>, vector<28x28xf32>
    %cst_29 = arith.constant dense<0xFF800000> : vector<28xf32>
    %37 = vector.multi_reduction <maximumf>, %36, %cst_29 [1] : vector<28x28xf32> to vector<28xf32>
    %38 = vector.shape_cast %37 : vector<28xf32> to vector<28x1xf32>
    %39 = vector.broadcast %38 : vector<28x1xf32> to vector<28x28xf32>
    %40 = arith.subf %36, %39 : vector<28x28xf32>
    %41 = math.exp %40 : vector<28x28xf32>
    %cst_30 = arith.constant dense<0.000000e+00> : vector<28xf32>
    %42 = vector.multi_reduction <add>, %41, %cst_30 [1] : vector<28x28xf32> to vector<28xf32>
    %43 = vector.shape_cast %42 : vector<28xf32> to vector<28x1xf32>
    %44 = tpu.reciprocal %43 {approx = true} : vector<28x1xf32> -> vector<28x1xf32>
    %45 = vector.broadcast %44 : vector<28x1xf32> to vector<28x28xf32>
    %46 = arith.mulf %41, %45 : vector<28x28xf32>
    %47 = arith.truncf %46 : vector<28x28xf32> to vector<28x28xbf16>
    %48 = vector.extract_strided_slice %26 {offsets = [0, 0], sizes = [28, 16], strides = [1, 1]} : vector<28x32xbf16> to vector<28x16xbf16>
    %cst_31 = arith.constant dense<0.000000e+00> : vector<28x16xf32>
    %49 = tpu.matmul %47, %48, %cst_31 {dimension_numbers = #tpu.dot_dimension_numbers<[1], [0], [0], [1], [0, 0, 1, 1], [], []>} : vector<28x28xbf16>, vector<28x16xbf16>, vector<28x16xf32> -> vector<28x16xf32>
    %50 = arith.truncf %49 : vector<28x16xf32> to vector<28x16xbf16>
    %51 = vector.extract_strided_slice %27 {offsets = [0, 0], sizes = [16, 32], strides = [1, 1]} : vector<32x32xbf16> to vector<16x32xbf16>
    %cst_32 = arith.constant dense<0.000000e+00> : vector<28x32xf32>
    %52 = tpu.matmul %50, %51, %cst_32 {dimension_numbers = #tpu.dot_dimension_numbers<[1], [0], [0], [1], [0, 0, 1, 1], [], []>} : vector<28x16xbf16>, vector<16x32xbf16>, vector<28x32xf32> -> vector<28x32xf32>
    %53 = arith.addf %31, %52 : vector<28x32xf32>
    %54 = vector.extract_strided_slice %24 {offsets = [0, 16], sizes = [28, 16], strides = [1, 1]} : vector<28x32xbf16> to vector<28x16xbf16>
    %55 = vector.extract_strided_slice %25 {offsets = [0, 16], sizes = [28, 16], strides = [1, 1]} : vector<28x32xbf16> to vector<28x16xbf16>
    %cst_33 = arith.constant dense<0.000000e+00> : vector<28x28xf32>
    %56 = tpu.matmul %54, %55, %cst_33 {dimension_numbers = #tpu.dot_dimension_numbers<[1], [1], [0], [0], [0, 0, 1, 0], [], []>} : vector<28x16xbf16>, vector<28x16xbf16>, vector<28x28xf32> -> vector<28x28xf32>
    %cst_34 = arith.constant -1.000000e+30 : f32
    %57 = vector.broadcast %cst_34 : f32 to vector<28x28xf32>
    %58 = arith.select %30, %56, %57 : vector<28x28xi1>, vector<28x28xf32>
    %cst_35 = arith.constant dense<0xFF800000> : vector<28xf32>
    %59 = vector.multi_reduction <maximumf>, %58, %cst_35 [1] : vector<28x28xf32> to vector<28xf32>
    %60 = vector.shape_cast %59 : vector<28xf32> to vector<28x1xf32>
    %61 = vector.broadcast %60 : vector<28x1xf32> to vector<28x28xf32>
    %62 = arith.subf %58, %61 : vector<28x28xf32>
    %63 = math.exp %62 : vector<28x28xf32>
    %cst_36 = arith.constant dense<0.000000e+00> : vector<28xf32>
    %64 = vector.multi_reduction <add>, %63, %cst_36 [1] : vector<28x28xf32> to vector<28xf32>
    %65 = vector.shape_cast %64 : vector<28xf32> to vector<28x1xf32>
    %66 = tpu.reciprocal %65 {approx = true} : vector<28x1xf32> -> vector<28x1xf32>
    %67 = vector.broadcast %66 : vector<28x1xf32> to vector<28x28xf32>
    %68 = arith.mulf %63, %67 : vector<28x28xf32>
    %69 = arith.truncf %68 : vector<28x28xf32> to vector<28x28xbf16>
    %70 = vector.extract_strided_slice %26 {offsets = [0, 16], sizes = [28, 16], strides = [1, 1]} : vector<28x32xbf16> to vector<28x16xbf16>
    %cst_37 = arith.constant dense<0.000000e+00> : vector<28x16xf32>
    %71 = tpu.matmul %69, %70, %cst_37 {dimension_numbers = #tpu.dot_dimension_numbers<[1], [0], [0], [1], [0, 0, 1, 1], [], []>} : vector<28x28xbf16>, vector<28x16xbf16>, vector<28x16xf32> -> vector<28x16xf32>
    %72 = arith.truncf %71 : vector<28x16xf32> to vector<28x16xbf16>
    %73 = vector.extract_strided_slice %27 {offsets = [16, 0], sizes = [16, 32], strides = [1, 1]} : vector<32x32xbf16> to vector<16x32xbf16>
    %cst_38 = arith.constant dense<0.000000e+00> : vector<28x32xf32>
    %74 = tpu.matmul %72, %73, %cst_38 {dimension_numbers = #tpu.dot_dimension_numbers<[1], [0], [0], [1], [0, 0, 1, 1], [], []>} : vector<28x16xbf16>, vector<16x32xbf16>, vector<28x32xf32> -> vector<28x32xf32>
    %75 = arith.addf %53, %74 : vector<28x32xf32>
    %c0_39 = arith.constant 0 : index
    %c0_40 = arith.constant 0 : index
    %76 = vector.load %arg10[%c0_39, %c0_40] : memref<1x32xf32, #tpu.memory_space<vmem>>, vector<1x32xf32>
    %77 = vector.broadcast %76 : vector<1x32xf32> to vector<28x32xf32>
    %78 = arith.addf %75, %77 : vector<28x32xf32>
    %79 = arith.addf %5, %78 : vector<28x32xf32>
    %c0_41 = arith.constant 0 : index
    %c0_42 = arith.constant 0 : index
    %80 = vector.load %arg11[%c0_41, %c0_42] : memref<1x32xf32, #tpu.memory_space<vmem>>, vector<1x32xf32>
    %c0_43 = arith.constant 0 : index
    %c0_44 = arith.constant 0 : index
    %81 = vector.load %arg12[%c0_43, %c0_44] : memref<1x32xf32, #tpu.memory_space<vmem>>, vector<1x32xf32>
    %cst_45 = arith.constant dense<0.000000e+00> : vector<28xf32>
    %82 = vector.multi_reduction <add>, %79, %cst_45 [1] : vector<28x32xf32> to vector<28xf32>
    %83 = vector.shape_cast %82 : vector<28xf32> to vector<28x1xf32>
    %cst_46 = arith.constant 3.200000e+01 : f32
    %84 = vector.broadcast %cst_46 : f32 to vector<28x1xf32>
    %85 = arith.divf %83, %84 : vector<28x1xf32>
    %86 = vector.broadcast %85 : vector<28x1xf32> to vector<28x32xf32>
    %87 = arith.subf %79, %86 : vector<28x32xf32>
    %88 = arith.mulf %87, %87 : vector<28x32xf32>
    %cst_47 = arith.constant dense<0.000000e+00> : vector<28xf32>
    %89 = vector.multi_reduction <add>, %88, %cst_47 [1] : vector<28x32xf32> to vector<28xf32>
    %90 = vector.shape_cast %89 : vector<28xf32> to vector<28x1xf32>
    %cst_48 = arith.constant 3.200000e+01 : f32
    %91 = vector.broadcast %cst_48 : f32 to vector<28x1xf32>
    %92 = arith.divf %90, %91 : vector<28x1xf32>
    %93 = vector.broadcast %85 : vector<28x1xf32> to vector<28x32xf32>
    %94 = arith.subf %79, %93 : vector<28x32xf32>
    %cst_49 = arith.constant 9.99999974E-6 : f32
    %95 = vector.broadcast %cst_49 : f32 to vector<28x1xf32>
    %96 = arith.addf %92, %95 : vector<28x1xf32>
    %97 = math.rsqrt %96 : vector<28x1xf32>
    %98 = vector.broadcast %97 : vector<28x1xf32> to vector<28x32xf32>
    %99 = arith.mulf %94, %98 : vector<28x32xf32>
    %100 = vector.broadcast %80 : vector<1x32xf32> to vector<28x32xf32>
    %101 = arith.mulf %99, %100 : vector<28x32xf32>
    %102 = vector.broadcast %81 : vector<1x32xf32> to vector<28x32xf32>
    %103 = arith.addf %101, %102 : vector<28x32xf32>
    %104 = arith.truncf %103 : vector<28x32xf32> to vector<28x32xbf16>
    %c0_50 = arith.constant 0 : index
    %c0_51 = arith.constant 0 : index
    %105 = vector.load %arg13[%c0_50, %c0_51] : memref<32x128xbf16, #tpu.memory_space<vmem>>, vector<32x128xbf16>
    %cst_52 = arith.constant dense<0.000000e+00> : vector<28x128xf32>
    %106 = tpu.matmul %104, %105, %cst_52 {dimension_numbers = #tpu.dot_dimension_numbers<[1], [0], [0], [1], [0, 0, 1, 1], [], []>} : vector<28x32xbf16>, vector<32x128xbf16>, vector<28x128xf32> -> vector<28x128xf32>
    %c0_53 = arith.constant 0 : index
    %c0_54 = arith.constant 0 : index
    %107 = vector.load %arg14[%c0_53, %c0_54] : memref<1x128xf32, #tpu.memory_space<vmem>>, vector<1x128xf32>
    %108 = vector.broadcast %107 : vector<1x128xf32> to vector<28x128xf32>
    %109 = arith.addf %106, %108 : vector<28x128xf32>
    %cst_55 = arith.constant 5.000000e-01 : f32
    %110 = vector.broadcast %cst_55 : f32 to vector<28x128xf32>
    %111 = arith.mulf %110, %109 : vector<28x128xf32>
    %cst_56 = arith.constant 0.707106769 : f32
    %112 = vector.broadcast %cst_56 : f32 to vector<28x128xf32>
    %113 = arith.mulf %109, %112 : vector<28x128xf32>
    %114 = math.erf %113 : vector<28x128xf32>
    %cst_57 = arith.constant 1.000000e+00 : f32
    %115 = vector.broadcast %cst_57 : f32 to vector<28x128xf32>
    %116 = arith.addf %115, %114 : vector<28x128xf32>
    %117 = arith.mulf %111, %116 : vector<28x128xf32>
    %118 = arith.truncf %117 : vector<28x128xf32> to vector<28x128xbf16>
    %c0_58 = arith.constant 0 : index
    %c0_59 = arith.constant 0 : index
    %119 = vector.load %arg15[%c0_58, %c0_59] : memref<128x32xbf16, #tpu.memory_space<vmem>>, vector<128x32xbf16>
    %cst_60 = arith.constant dense<0.000000e+00> : vector<28x32xf32>
    %120 = tpu.matmul %118, %119, %cst_60 {dimension_numbers = #tpu.dot_dimension_numbers<[1], [0], [0], [1], [0, 0, 1, 1], [], []>} : vector<28x128xbf16>, vector<128x32xbf16>, vector<28x32xf32> -> vector<28x32xf32>
    %c0_61 = arith.constant 0 : index
    %c0_62 = arith.constant 0 : index
    %121 = vector.load %arg16[%c0_61, %c0_62] : memref<1x32xf32, #tpu.memory_space<vmem>>, vector<1x32xf32>
    %122 = vector.broadcast %121 : vector<1x32xf32> to vector<28x32xf32>
    %123 = arith.addf %120, %122 : vector<28x32xf32>
    %124 = arith.addf %103, %123 : vector<28x32xf32>
    %c0_63 = arith.constant 0 : index
    %c0_64 = arith.constant 0 : index
    %125 = vector.load %arg17[%c0_63, %c0_64] : memref<1x32xf32, #tpu.memory_space<vmem>>, vector<1x32xf32>
    %c0_65 = arith.constant 0 : index
    %c0_66 = arith.constant 0 : index
    %126 = vector.load %arg18[%c0_65, %c0_66] : memref<1x32xf32, #tpu.memory_space<vmem>>, vector<1x32xf32>
    %cst_67 = arith.constant dense<0.000000e+00> : vector<28xf32>
    %127 = vector.multi_reduction <add>, %124, %cst_67 [1] : vector<28x32xf32> to vector<28xf32>
    %128 = vector.shape_cast %127 : vector<28xf32> to vector<28x1xf32>
    %cst_68 = arith.constant 3.200000e+01 : f32
    %129 = vector.broadcast %cst_68 : f32 to vector<28x1xf32>
    %130 = arith.divf %128, %129 : vector<28x1xf32>
    %131 = vector.broadcast %130 : vector<28x1xf32> to vector<28x32xf32>
    %132 = arith.subf %124, %131 : vector<28x32xf32>
    %133 = arith.mulf %132, %132 : vector<28x32xf32>
    %cst_69 = arith.constant dense<0.000000e+00> : vector<28xf32>
    %134 = vector.multi_reduction <add>, %133, %cst_69 [1] : vector<28x32xf32> to vector<28xf32>
    %135 = vector.shape_cast %134 : vector<28xf32> to vector<28x1xf32>
    %cst_70 = arith.constant 3.200000e+01 : f32
    %136 = vector.broadcast %cst_70 : f32 to vector<28x1xf32>
    %137 = arith.divf %135, %136 : vector<28x1xf32>
    %138 = vector.broadcast %130 : vector<28x1xf32> to vector<28x32xf32>
    %139 = arith.subf %124, %138 : vector<28x32xf32>
    %cst_71 = arith.constant 9.99999974E-6 : f32
    %140 = vector.broadcast %cst_71 : f32 to vector<28x1xf32>
    %141 = arith.addf %137, %140 : vector<28x1xf32>
    %142 = math.rsqrt %141 : vector<28x1xf32>
    %143 = vector.broadcast %142 : vector<28x1xf32> to vector<28x32xf32>
    %144 = arith.mulf %139, %143 : vector<28x32xf32>
    %145 = vector.broadcast %125 : vector<1x32xf32> to vector<28x32xf32>
    %146 = arith.mulf %144, %145 : vector<28x32xf32>
    %147 = vector.broadcast %126 : vector<1x32xf32> to vector<28x32xf32>
    %148 = arith.addf %146, %147 : vector<28x32xf32>
    %149 = vector.extract_strided_slice %148 {offsets = [0, 0], sizes = [8, 32], strides = [1, 1]} : vector<28x32xf32> to vector<8x32xf32>
    %c0_72 = arith.constant 0 : index
    %c0_73 = arith.constant 0 : index
    %c0_74 = arith.constant 0 : index
    %150 = vector.load %arg19[%c0_72, %c0_73, %c0_74] : memref<1x8x32xf32, #tpu.memory_space<vmem>>, vector<1x8x32xf32>
    %151 = vector.shape_cast %150 : vector<1x8x32xf32> to vector<8x32xf32>
    %152 = vector.shape_cast %149 : vector<8x32xf32> to vector<1x8x32xf32>
    tpu.vector_store %arg19[%c0_72, %c0_73, %c0_74], %152 {strides = array<i32>} : memref<1x8x32xf32, #tpu.memory_space<vmem>>, vector<1x8x32xf32>,
    return
  }
  func.func @transform_0(%arg0: i32) -> (i32, i32, i32) {
    %c0_i32 = arith.constant 0 : i32
    %c0_i32_0 = arith.constant 0 : i32
    %c0_i32_1 = arith.constant 0 : i32
    return %arg0, %c0_i32, %c0_i32_0 : i32, i32, i32
  }
  func.func @transform_1(%arg0: i32) -> (i32, i32) {
    %c0_i32 = arith.constant 0 : i32
    %c0_i32_0 = arith.constant 0 : i32
    %c0_i32_1 = arith.constant 0 : i32
    return %c0_i32, %c0_i32_0 : i32, i32
  }
  func.func @transform_2(%arg0: i32) -> (i32, i32) {
    %c0_i32 = arith.constant 0 : i32
    %c0_i32_0 = arith.constant 0 : i32
    %c0_i32_1 = arith.constant 0 : i32
    return %c0_i32, %c0_i32_0 : i32, i32
  }
  func.func @transform_3(%arg0: i32) -> (i32, i32) {
    %c0_i32 = arith.constant 0 : i32
    %c0_i32_0 = arith.constant 0 : i32
    %c0_i32_1 = arith.constant 0 : i32
    return %c0_i32, %c0_i32_0 : i32, i32
  }
  func.func @transform_4(%arg0: i32) -> (i32, i32) {
    %c0_i32 = arith.constant 0 : i32
    %c0_i32_0 = arith.constant 0 : i32
    %c0_i32_1 = arith.constant 0 : i32
    return %c0_i32, %c0_i32_0 : i32, i32
  }
  func.func @transform_5(%arg0: i32) -> (i32, i32) {
    %c0_i32 = arith.constant 0 : i32
    %c0_i32_0 = arith.constant 0 : i32
    %c0_i32_1 = arith.constant 0 : i32
    return %c0_i32, %c0_i32_0 : i32, i32
  }
  func.func @transform_6(%arg0: i32) -> (i32, i32) {
    %c0_i32 = arith.constant 0 : i32
    %c0_i32_0 = arith.constant 0 : i32
    %c0_i32_1 = arith.constant 0 : i32
    return %c0_i32, %c0_i32_0 : i32, i32
  }
  func.func @transform_7(%arg0: i32) -> (i32, i32) {
    %c0_i32 = arith.constant 0 : i32
    %c0_i32_0 = arith.constant 0 : i32
    %c0_i32_1 = arith.constant 0 : i32
    return %c0_i32, %c0_i32_0 : i32, i32
  }
  func.func @transform_8(%arg0: i32) -> (i32, i32) {
    %c0_i32 = arith.constant 0 : i32
    %c0_i32_0 = arith.constant 0 : i32
    %c0_i32_1 = arith.constant 0 : i32
    return %c0_i32, %c0_i32_0 : i32, i32
  }
  func.func @transform_9(%arg0: i32) -> (i32, i32) {
    %c0_i32 = arith.constant 0 : i32
    %c0_i32_0 = arith.constant 0 : i32
    %c0_i32_1 = arith.constant 0 : i32
    return %c0_i32, %c0_i32_0 : i32, i32
  }
  func.func @transform_10(%arg0: i32) -> (i32, i32) {
    %c0_i32 = arith.constant 0 : i32
    %c0_i32_0 = arith.constant 0 : i32
    %c0_i32_1 = arith.constant 0 : i32
    return %c0_i32, %c0_i32_0 : i32, i32
  }
  func.func @transform_11(%arg0: i32) -> (i32, i32) {
    %c0_i32 = arith.constant 0 : i32
    %c0_i32_0 = arith.constant 0 : i32
    %c0_i32_1 = arith.constant 0 : i32
    return %c0_i32, %c0_i32_0 : i32, i32
  }
  func.func @transform_12(%arg0: i32) -> (i32, i32) {
    %c0_i32 = arith.constant 0 : i32
    %c0_i32_0 = arith.constant 0 : i32
    %c0_i32_1 = arith.constant 0 : i32
    return %c0_i32, %c0_i32_0 : i32, i32
  }
  func.func @transform_13(%arg0: i32) -> (i32, i32) {
    %c0_i32 = arith.constant 0 : i32
    %c0_i32_0 = arith.constant 0 : i32
    %c0_i32_1 = arith.constant 0 : i32
    return %c0_i32, %c0_i32_0 : i32, i32
  }
  func.func @transform_14(%arg0: i32) -> (i32, i32) {
    %c0_i32 = arith.constant 0 : i32
    %c0_i32_0 = arith.constant 0 : i32
    %c0_i32_1 = arith.constant 0 : i32
    return %c0_i32, %c0_i32_0 : i32, i32
  }
  func.func @transform_15(%arg0: i32) -> (i32, i32) {
    %c0_i32 = arith.constant 0 : i32
    %c0_i32_0 = arith.constant 0 : i32
    %c0_i32_1 = arith.constant 0 : i32
    return %c0_i32, %c0_i32_0 : i32, i32
  }
  func.func @transform_16(%arg0: i32) -> (i32, i32) {
    %c0_i32 = arith.constant 0 : i32
    %c0_i32_0 = arith.constant 0 : i32
    %c0_i32_1 = arith.constant 0 : i32
    return %c0_i32, %c0_i32_0 : i32, i32
  }
  func.func @transform_17(%arg0: i32) -> (i32, i32) {
    %c0_i32 = arith.constant 0 : i32
    %c0_i32_0 = arith.constant 0 : i32
    %c0_i32_1 = arith.constant 0 : i32
    return %c0_i32, %c0_i32_0 : i32, i32
  }
  func.func @transform_18(%arg0: i32) -> (i32, i32, i32) {
    %c0_i32 = arith.constant 0 : i32
    %c0_i32_0 = arith.constant 0 : i32
    %c0_i32_1 = arith.constant 0 : i32
    return %arg0, %c0_i32, %c0_i32_0 : i32, i32, i32
  }
}

</mosaic_0001>

<llo_original>
// kernel: tpu_custom_call.1
$region0: #{tpu_custom_call.1}
  #allocation0 [shape = 'u32[]', space=smem, size = 0x4, offset = 0x4, fixed_abs, tag = 'smem constant byte address 0x4 - core index']
  #allocation1 [shape = 'u32[144,128]{1,0:T(1,128)}', space=vmem, size = 0x12000, scoped, tag = 'internal scratch']
  #allocation2 [shape = 'f32[28,32]{1,0:T(8,128)}', space=vmem, size = 0x4000, scoped, tag = 'scratch operand']
  %s0 = inlined_call_operand.hbm [shape: f32[2,8,32], index: 0, kind: input, shape index: {}]
  %s1 = inlined_call_operand.hbm [shape: f32[20,32], index: 1, kind: input, shape index: {}]
  %s2 = inlined_call_operand.hbm [shape: bf16[32,32], index: 2, kind: input, shape index: {}]
  %s3 = inlined_call_operand.hbm [shape: f32[1,32], index: 3, kind: input, shape index: {}]
  %s4 = inlined_call_operand.hbm [shape: bf16[32,32], index: 4, kind: input, shape index: {}]
  %s5 = inlined_call_operand.hbm [shape: f32[1,32], index: 5, kind: input, shape index: {}]
  %s6 = inlined_call_operand.hbm [shape: bf16[32,32], index: 6, kind: input, shape index: {}]
  %s7 = inlined_call_operand.hbm [shape: f32[1,32], index: 7, kind: input, shape index: {}]
  %s8 = inlined_call_operand.hbm [shape: bf16[32,32], index: 8, kind: input, shape index: {}]
  %s9 = inlined_call_operand.hbm [shape: f32[1,32], index: 9, kind: input, shape index: {}]
  %s10 = inlined_call_operand.hbm [shape: f32[1,32], index: 10, kind: input, shape index: {}]
  %s11 = inlined_call_operand.hbm [shape: f32[1,32], index: 11, kind: input, shape index: {}]
  %s12 = inlined_call_operand.hbm [shape: bf16[32,128], index: 12, kind: input, shape index: {}]
  %s13 = inlined_call_operand.hbm [shape: f32[1,128], index: 13, kind: input, shape index: {}]
  %s14 = inlined_call_operand.hbm [shape: bf16[128,32], index: 14, kind: input, shape index: {}]
  %s15 = inlined_call_operand.hbm [shape: f32[1,32], index: 15, kind: input, shape index: {}]
  %s16 = inlined_call_operand.hbm [shape: f32[1,32], index: 16, kind: input, shape index: {}]
  %s17 = inlined_call_operand.hbm [shape: f32[1,32], index: 17, kind: input, shape index: {}]
  %s18 = inlined_call_operand.hbm [shape: f32[2,8,32], index: 18, kind: output, shape index: {}]
  %s19 = sld [smem:[#allocation0]]
  $region177: #{tpu_custom_call.1} parent=0
    _
  %s21 = ssub.s32 1, %s19
  %s22 = scalar_select 0, %s21, %s19
  $region1: #{tpu_custom_call.1} parent=0
    #allocation3 [shape = 'u8[8192]{0}', space=vmem, size = 0x2000, scoped, tag = 'input window, operand 0']
    #allocation4 [shape = 's32[2]{0}', space=sflag, size = 0x8, scoped, tag = 'scoped memory for tpu_custom_call.1']
    #allocation5 [shape = 's32[2]{0}', space=sflag, size = 0x8, scoped, tag = 'scoped memory for tpu_custom_call.1']
    #allocation6 [shape = 'u8[12288]{0}', space=vmem, size = 0x3000, scoped, tag = 'input window, operand 1, single buffered']
    #allocation7 [shape = 's32[1]{0}', space=sflag, size = 0x4, scoped, tag = 'scoped memory for tpu_custom_call.1']
    #allocation8 [shape = 'u8[8192]{0}', space=vmem, size = 0x2000, scoped, tag = 'input window, operand 2, single buffered']
    #allocation9 [shape = 'u8[512]{0}', space=vmem, size = 0x400, scoped, tag = 'input window, operand 3, single buffered']
    #allocation10 [shape = 's32[1]{0}', space=sflag, size = 0x4, scoped, tag = 'scoped memory for tpu_custom_call.1']
    #allocation11 [shape = 'u8[8192]{0}', space=vmem, size = 0x2000, scoped, tag = 'input window, operand 4, single buffered']
    #allocation12 [shape = 'u8[512]{0}', space=vmem, size = 0x400, scoped, tag = 'input window, operand 5, single buffered']
    #allocation13 [shape = 's32[1]{0}', space=sflag, size = 0x4, scoped, tag = 'scoped memory for tpu_custom_call.1']
    #allocation14 [shape = 'u8[8192]{0}', space=vmem, size = 0x2000, scoped, tag = 'input window, operand 6, single buffered']
    #allocation15 [shape = 'u8[512]{0}', space=vmem, size = 0x400, scoped, tag = 'input window, operand 7, single buffered']
    #allocation16 [shape = 's32[1]{0}', space=sflag, size = 0x4, scoped, tag = 'scoped memory for tpu_custom_call.1']
    #allocation17 [shape = 'u8[8192]{0}', space=vmem, size = 0x2000, scoped, tag = 'input window, operand 8, single buffered']
    #allocation18 [shape = 'u8[512]{0}', space=vmem, size = 0x400, scoped, tag = 'input window, operand 9, single buffered']
    #allocation19 [shape = 's32[1]{0}', space=sflag, size = 0x4, scoped, tag = 'scoped memory for tpu_custom_call.1']
    #allocation20 [shape = 'u8[512]{0}', space=vmem, size = 0x400, scoped, tag = 'input window, operand 10, single buffered']
    #allocation21 [shape = 'u8[512]{0}', space=vmem, size = 0x400, scoped, tag = 'input window, operand 11, single buffered']
    #allocation22 [shape = 's32[1]{0}', space=sflag, size = 0x4, scoped, tag = 'scoped memory for tpu_custom_call.1']
    #allocation23 [shape = 'u8[8192]{0}', space=vmem, size = 0x2000, scoped, tag = 'input window, operand 12, single buffered']
    #allocation24 [shape = 'u8[512]{0}', space=vmem, size = 0x400, scoped, tag = 'input window, operand 13, single buffered']
    #allocation25 [shape = 's32[1]{0}', space=sflag, size = 0x4, scoped, tag = 'scoped memory for tpu_custom_call.1']
    #allocation26 [shape = 'u8[32768]{0}', space=vmem, size = 0x8000, scoped, tag = 'input window, operand 14, single buffered']
    #allocation27 [shape = 'u8[512]{0}', space=vmem, size = 0x400, scoped, tag = 'input window, operand 15, single buffered']
    #allocation28 [shape = 's32[1]{0}', space=sflag, size = 0x4, scoped, tag = 'scoped memory for tpu_custom_call.1']
    #allocation29 [shape = 'u8[512]{0}', space=vmem, size = 0x400, scoped, tag = 'input window, operand 16, single buffered']
    #allocation30 [shape = 'u8[512]{0}', space=vmem, size = 0x400, scoped, tag = 'input window, operand 17, single buffered']
    #allocation31 [shape = 's32[1]{0}', space=sflag, size = 0x4, scoped, tag = 'scoped memory for tpu_custom_call.1']
    #allocation32 [shape = 'u8[8192]{0}', space=vmem, size = 0x2000, scoped, tag = 'output window, operand 0']
    %23 = vsyncpa [#allocation4], 0
    %s24 = scalar_lea.sflag [#allocation4], 1
    %25 = vsyncpa %s24, 0
    %26 = vsyncpa [#allocation7], 0
    %27 = vsyncpa [#allocation10], 0
    %28 = vsyncpa [#allocation13], 0
    %29 = vsyncpa [#allocation16], 0
    %30 = vsyncpa [#allocation19], 0
    %31 = vsyncpa [#allocation22], 0
    %32 = vsyncpa [#allocation25], 0
    %33 = vsyncpa [#allocation28], 0
    %34 = vsyncpa [#allocation31], 0
    %35 = vsyncpa [#allocation5], 0
    %s36 = scalar_lea.sflag [#allocation5], 1
    %37 = vsyncpa %s36, 0
    loop: start=0, step=1, limit=4
    $region2: #{tpu_custom_call.1} parent=1 // loop_pre_header
      _
    $region3: #{tpu_custom_call.1} parent=1 // loop_header
      %s39 = sphi 0, %s43
      %p40 = scmp.ge.s32.totalorder %s39, 4
      %s49 = sphi 0, %s51
      %s52 = sphi 0, %s49
      %s53 = sphi 0, %s52
      %s69 = sphi 0, %s53
      %s73 = sphi 0, %s73
      %s75 = sphi 0, %s73
      %s76 = sphi 0, %s75
      %s90 = sphi 0, %s76
      %s94 = sphi 0, %s94
      %s96 = sphi 0, %s94
      %s97 = sphi 0, %s96
      %s111 = sphi 0, %s97
      %s115 = sphi 0, %s115
      %s117 = sphi 0, %s115
      %s118 = sphi 0, %s117
      %s132 = sphi 0, %s118
      %s136 = sphi 0, %s136
      %s138 = sphi 0, %s136
      %s139 = sphi 0, %s138
      %s153 = sphi 0, %s139
      %s157 = sphi 0, %s157
      %s159 = sphi 0, %s157
      %s160 = sphi 0, %s159
      %s174 = sphi 0, %s160
      %s178 = sphi 0, %s178
      %s180 = sphi 0, %s178
      %s181 = sphi 0, %s180
      %s195 = sphi 0, %s181
      %s199 = sphi 0, %s199
      %s201 = sphi 0, %s199
      %s202 = sphi 0, %s201
      %s216 = sphi 0, %s202
      %s220 = sphi 0, %s220
      %s222 = sphi 0, %s220
      %s223 = sphi 0, %s222
      %s237 = sphi 0, %s223
      %s241 = sphi 0, %s241
      %s243 = sphi 0, %s241
      %s244 = sphi 0, %s243
      %s258 = sphi 0, %s244
      %s262 = sphi 0, %s262
      %s264 = sphi 0, %s262
      %s265 = sphi 0, %s264
      %s279 = sphi 0, %s265
      %s283 = sphi 0, %s283
      %s285 = sphi 0, %s283
      %s286 = sphi 0, %s285
      %s300 = sphi 0, %s286
      %s304 = sphi 0, %s304
      %s306 = sphi 0, %s304
      %s307 = sphi 0, %s306
      %s321 = sphi 0, %s307
      %s325 = sphi 0, %s325
      %s327 = sphi 0, %s325
      %s328 = sphi 0, %s327
      %s342 = sphi 0, %s328
      %s346 = sphi 0, %s346
      %s348 = sphi 0, %s346
      %s349 = sphi 0, %s348
      %s363 = sphi 0, %s349
      %s367 = sphi 0, %s367
      %s369 = sphi 0, %s367
      %s370 = sphi 0, %s369
      %s384 = sphi 0, %s370
      %s388 = sphi 0, %s388
      %s390 = sphi 0, %s388
      %s391 = sphi 0, %s390
      %s405 = sphi 0, %s391
      %s409 = sphi 0, %s409
      %s411 = sphi 0, %s409
      %s412 = sphi 0, %s411
      %s426 = sphi 0, %s412
      %s432 = sphi 0, %s434
      %s435 = sphi 0, %s432
      %s436 = sphi 0, %s435
      %s452 = sphi 0, %s436
    $region4: #{tpu_custom_call.1} parent=1 // loop_header_branch
      %42 = sbr.rel (%p40) target = $region8
    $region5: #{tpu_custom_call.1} parent=1 // loop_body
      %s44 = ssub.s32 %s39, 1
      %s45 = ssub.s32 %s39, 2
      %s46 = sadd.s32 %s39, 1
      %s47 = ssub.s32 %s39, %s46
      %p48 = scmp.eq.s32.totalorder %s47, 0
      %s50 = sadd.s32 %s49, 1
      %s51 = scalar_select %p48, %s49, %s50
      %p54 = pneg %p48
      %p55 = scmp.eq.s32.totalorder %s39, 1
      %p56 = por %p54, %p55
      %p57 = scmp.ne.s32.totalorder %s49, %s52
      %p58 = scmp.eq.s32.totalorder %s39, 0
      %p59 = por %p57, %p58
      %p60 = scmp.ne.s32.totalorder %s49, %s52
      %p61 = scmp.eq.s32.totalorder %s44, 1
      %p62 = por %p60, %p61
      %p63 = scmp.ne.s32.totalorder %s52, %s53
      %p64 = scmp.eq.s32.totalorder %s44, 0
      %p65 = por %p63, %p64
      %p66 = scmp.ne.s32.totalorder %s52, %s53
      %p67 = scmp.eq.s32.totalorder %s45, 1
      %p68 = por %p66, %p67
      %p70 = scmp.ne.s32.totalorder %s53, %s69
      %p71 = scmp.eq.s32.totalorder %s45, 0
      %p72 = por %p70, %p71
      %s74 = sadd.s32 %s73, 1
      %p77 = scmp.eq.s32.totalorder %s39, 1
      %p78 = scmp.ne.s32.totalorder %s73, %s75
      %p79 = scmp.eq.s32.totalorder %s39, 0
      %p80 = por %p78, %p79
      %p81 = scmp.ne.s32.totalorder %s73, %s75
      %p82 = scmp.eq.s32.totalorder %s44, 1
      %p83 = por %p81, %p82
      %p84 = scmp.ne.s32.totalorder %s75, %s76
      %p85 = scmp.eq.s32.totalorder %s44, 0
      %p86 = por %p84, %p85
      %p87 = scmp.ne.s32.totalorder %s75, %s76
      %p88 = scmp.eq.s32.totalorder %s45, 1
      %p89 = por %p87, %p88
      %p91 = scmp.ne.s32.totalorder %s76, %s90
      %p92 = scmp.eq.s32.totalorder %s45, 0
      %p93 = por %p91, %p92
      %s95 = sadd.s32 %s94, 1
      %p98 = scmp.eq.s32.totalorder %s39, 1
      %p99 = scmp.ne.s32.totalorder %s94, %s96
      %p100 = scmp.eq.s32.totalorder %s39, 0
      %p101 = por %p99, %p100
      %p102 = scmp.ne.s32.totalorder %s94, %s96
      %p103 = scmp.eq.s32.totalorder %s44, 1
      %p104 = por %p102, %p103
      %p105 = scmp.ne.s32.totalorder %s96, %s97
      %p106 = scmp.eq.s32.totalorder %s44, 0
      %p107 = por %p105, %p106
      %p108 = scmp.ne.s32.totalorder %s96, %s97
      %p109 = scmp.eq.s32.totalorder %s45, 1
      %p110 = por %p108, %p109
      %p112 = scmp.ne.s32.totalorder %s97, %s111
      %p113 = scmp.eq.s32.totalorder %s45, 0
      %p114 = por %p112, %p113
      %s116 = sadd.s32 %s115, 1
      %p119 = scmp.eq.s32.totalorder %s39, 1
      %p120 = scmp.ne.s32.totalorder %s115, %s117
      %p121 = scmp.eq.s32.totalorder %s39, 0
      %p122 = por %p120, %p121
      %p123 = scmp.ne.s32.totalorder %s115, %s117
      %p124 = scmp.eq.s32.totalorder %s44, 1
      %p125 = por %p123, %p124
      %p126 = scmp.ne.s32.totalorder %s117, %s118
      %p127 = scmp.eq.s32.totalorder %s44, 0
      %p128 = por %p126, %p127
      %p129 = scmp.ne.s32.totalorder %s117, %s118
      %p130 = scmp.eq.s32.totalorder %s45, 1
      %p131 = por %p129, %p130
      %p133 = scmp.ne.s32.totalorder %s118, %s132
      %p134 = scmp.eq.s32.totalorder %s45, 0
      %p135 = por %p133, %p134
      %s137 = sadd.s32 %s136, 1
      %p140 = scmp.eq.s32.totalorder %s39, 1
      %p141 = scmp.ne.s32.totalorder %s136, %s138
      %p142 = scmp.eq.s32.totalorder %s39, 0
      %p143 = por %p141, %p142
      %p144 = scmp.ne.s32.totalorder %s136, %s138
      %p145 = scmp.eq.s32.totalorder %s44, 1
      %p146 = por %p144, %p145
      %p147 = scmp.ne.s32.totalorder %s138, %s139
      %p148 = scmp.eq.s32.totalorder %s44, 0
      %p149 = por %p147, %p148
      %p150 = scmp.ne.s32.totalorder %s138, %s139
      %p151 = scmp.eq.s32.totalorder %s45, 1
      %p152 = por %p150, %p151
      %p154 = scmp.ne.s32.totalorder %s139, %s153
      %p155 = scmp.eq.s32.totalorder %s45, 0
      %p156 = por %p154, %p155
      %s158 = sadd.s32 %s157, 1
      %p161 = scmp.eq.s32.totalorder %s39, 1
      %p162 = scmp.ne.s32.totalorder %s157, %s159
      %p163 = scmp.eq.s32.totalorder %s39, 0
      %p164 = por %p162, %p163
      %p165 = scmp.ne.s32.totalorder %s157, %s159
      %p166 = scmp.eq.s32.totalorder %s44, 1
      %p167 = por %p165, %p166
      %p168 = scmp.ne.s32.totalorder %s159, %s160
      %p169 = scmp.eq.s32.totalorder %s44, 0
      %p170 = por %p168, %p169
      %p171 = scmp.ne.s32.totalorder %s159, %s160
      %p172 = scmp.eq.s32.totalorder %s45, 1
      %p173 = por %p171, %p172
      %p175 = scmp.ne.s32.totalorder %s160, %s174
      %p176 = scmp.eq.s32.totalorder %s45, 0
      %p177 = por %p175, %p176
      %s179 = sadd.s32 %s178, 1
      %p182 = scmp.eq.s32.totalorder %s39, 1
      %p183 = scmp.ne.s32.totalorder %s178, %s180
      %p184 = scmp.eq.s32.totalorder %s39, 0
      %p185 = por %p183, %p184
      %p186 = scmp.ne.s32.totalorder %s178, %s180
      %p187 = scmp.eq.s32.totalorder %s44, 1
      %p188 = por %p186, %p187
      %p189 = scmp.ne.s32.totalorder %s180, %s181
      %p190 = scmp.eq.s32.totalorder %s44, 0
      %p191 = por %p189, %p190
      %p192 = scmp.ne.s32.totalorder %s180, %s181
      %p193 = scmp.eq.s32.totalorder %s45, 1
      %p194 = por %p192, %p193
      %p196 = scmp.ne.s32.totalorder %s181, %s195
      %p197 = scmp.eq.s32.totalorder %s45, 0
      %p198 = por %p196, %p197
      %s200 = sadd.s32 %s199, 1
      %p203 = scmp.eq.s32.totalorder %s39, 1
      %p204 = scmp.ne.s32.totalorder %s199, %s201
      %p205 = scmp.eq.s32.totalorder %s39, 0
      %p206 = por %p204, %p205
      %p207 = scmp.ne.s32.totalorder %s199, %s201
      %p208 = scmp.eq.s32.totalorder %s44, 1
      %p209 = por %p207, %p208
      %p210 = scmp.ne.s32.totalorder %s201, %s202
      %p211 = scmp.eq.s32.totalorder %s44, 0
      %p212 = por %p210, %p211
      %p213 = scmp.ne.s32.totalorder %s201, %s202
      %p214 = scmp.eq.s32.totalorder %s45, 1
      %p215 = por %p213, %p214
      %p217 = scmp.ne.s32.totalorder %s202, %s216
      %p218 = scmp.eq.s32.totalorder %s45, 0
      %p219 = por %p217, %p218
      %s221 = sadd.s32 %s220, 1
      %p224 = scmp.eq.s32.totalorder %s39, 1
      %p225 = scmp.ne.s32.totalorder %s220, %s222
      %p226 = scmp.eq.s32.totalorder %s39, 0
      %p227 = por %p225, %p226
      %p228 = scmp.ne.s32.totalorder %s220, %s222
      %p229 = scmp.eq.s32.totalorder %s44, 1
      %p230 = por %p228, %p229
      %p231 = scmp.ne.s32.totalorder %s222, %s223
      %p232 = scmp.eq.s32.totalorder %s44, 0
      %p233 = por %p231, %p232
      %p234 = scmp.ne.s32.totalorder %s222, %s223
      %p235 = scmp.eq.s32.totalorder %s45, 1
      %p236 = por %p234, %p235
      %p238 = scmp.ne.s32.totalorder %s223, %s237
      %p239 = scmp.eq.s32.totalorder %s45, 0
      %p240 = por %p238, %p239
      %s242 = sadd.s32 %s241, 1
      %p245 = scmp.eq.s32.totalorder %s39, 1
      %p246 = scmp.ne.s32.totalorder %s241, %s243
      %p247 = scmp.eq.s32.totalorder %s39, 0
      %p248 = por %p246, %p247
      %p249 = scmp.ne.s32.totalorder %s241, %s243
      %p250 = scmp.eq.s32.totalorder %s44, 1
      %p251 = por %p249, %p250
      %p252 = scmp.ne.s32.totalorder %s243, %s244
      %p253 = scmp.eq.s32.totalorder %s44, 0
      %p254 = por %p252, %p253
      %p255 = scmp.ne.s32.totalorder %s243, %s244
      %p256 = scmp.eq.s32.totalorder %s45, 1
      %p257 = por %p255, %p256
      %p259 = scmp.ne.s32.totalorder %s244, %s258
      %p260 = scmp.eq.s32.totalorder %s45, 0
      %p261 = por %p259, %p260
      %s263 = sadd.s32 %s262, 1
      %p266 = scmp.eq.s32.totalorder %s39, 1
      %p267 = scmp.ne.s32.totalorder %s262, %s264
      %p268 = scmp.eq.s32.totalorder %s39, 0
      %p269 = por %p267, %p268
      %p270 = scmp.ne.s32.totalorder %s262, %s264
      %p271 = scmp.eq.s32.totalorder %s44, 1
      %p272 = por %p270, %p271
      %p273 = scmp.ne.s32.totalorder %s264, %s265
      %p274 = scmp.eq.s32.totalorder %s44, 0
      %p275 = por %p273, %p274
      %p276 = scmp.ne.s32.totalorder %s264, %s265
      %p277 = scmp.eq.s32.totalorder %s45, 1
      %p278 = por %p276, %p277
      %p280 = scmp.ne.s32.totalorder %s265, %s279
      %p281 = scmp.eq.s32.totalorder %s45, 0
      %p282 = por %p280, %p281
      %s284 = sadd.s32 %s283, 1
      %p287 = scmp.eq.s32.totalorder %s39, 1
      %p288 = scmp.ne.s32.totalorder %s283, %s285
      %p289 = scmp.eq.s32.totalorder %s39, 0
      %p290 = por %p288, %p289
      %p291 = scmp.ne.s32.totalorder %s283, %s285
      %p292 = scmp.eq.s32.totalorder %s44, 1
      %p293 = por %p291, %p292
      %p294 = scmp.ne.s32.totalorder %s285, %s286
      %p295 = scmp.eq.s32.totalorder %s44, 0
      %p296 = por %p294, %p295
      %p297 = scmp.ne.s32.totalorder %s285, %s286
      %p298 = scmp.eq.s32.totalorder %s45, 1
      %p299 = por %p297, %p298
      %p301 = scmp.ne.s32.totalorder %s286, %s300
      %p302 = scmp.eq.s32.totalorder %s45, 0
      %p303 = por %p301, %p302
      %s305 = sadd.s32 %s304, 1
      %p308 = scmp.eq.s32.totalorder %s39, 1
      %p309 = scmp.ne.s32.totalorder %s304, %s306
      %p310 = scmp.eq.s32.totalorder %s39, 0
      %p311 = por %p309, %p310
      %p312 = scmp.ne.s32.totalorder %s304, %s306
      %p313 = scmp.eq.s32.totalorder %s44, 1
      %p314 = por %p312, %p313
      %p315 = scmp.ne.s32.totalorder %s306, %s307
      %p316 = scmp.eq.s32.totalorder %s44, 0
      %p317 = por %p315, %p316
      %p318 = scmp.ne.s32.totalorder %s306, %s307
      %p319 = scmp.eq.s32.totalorder %s45, 1
      %p320 = por %p318, %p319
      %p322 = scmp.ne.s32.totalorder %s307, %s321
      %p323 = scmp.eq.s32.totalorder %s45, 0
      %p324 = por %p322, %p323
      %s326 = sadd.s32 %s325, 1
      %p329 = scmp.eq.s32.totalorder %s39, 1
      %p330 = scmp.ne.s32.totalorder %s325, %s327
      %p331 = scmp.eq.s32.totalorder %s39, 0
      %p332 = por %p330, %p331
      %p333 = scmp.ne.s32.totalorder %s325, %s327
      %p334 = scmp.eq.s32.totalorder %s44, 1
      %p335 = por %p333, %p334
      %p336 = scmp.ne.s32.totalorder %s327, %s328
      %p337 = scmp.eq.s32.totalorder %s44, 0
      %p338 = por %p336, %p337
      %p339 = scmp.ne.s32.totalorder %s327, %s328
      %p340 = scmp.eq.s32.totalorder %s45, 1
      %p341 = por %p339, %p340
      %p343 = scmp.ne.s32.totalorder %s328, %s342
      %p344 = scmp.eq.s32.totalorder %s45, 0
      %p345 = por %p343, %p344
      %s347 = sadd.s32 %s346, 1
      %p350 = scmp.eq.s32.totalorder %s39, 1
      %p351 = scmp.ne.s32.totalorder %s346, %s348
      %p352 = scmp.eq.s32.totalorder %s39, 0
      %p353 = por %p351, %p352
      %p354 = scmp.ne.s32.totalorder %s346, %s348
      %p355 = scmp.eq.s32.totalorder %s44, 1
      %p356 = por %p354, %p355
      %p357 = scmp.ne.s32.totalorder %s348, %s349
      %p358 = scmp.eq.s32.totalorder %s44, 0
      %p359 = por %p357, %p358
      %p360 = scmp.ne.s32.totalorder %s348, %s349
      %p361 = scmp.eq.s32.totalorder %s45, 1
      %p362 = por %p360, %p361
      %p364 = scmp.ne.s32.totalorder %s349, %s363
      %p365 = scmp.eq.s32.totalorder %s45, 0
      %p366 = por %p364, %p365
      %s368 = sadd.s32 %s367, 1
      %p371 = scmp.eq.s32.totalorder %s39, 1
      %p372 = scmp.ne.s32.totalorder %s367, %s369
      %p373 = scmp.eq.s32.totalorder %s39, 0
      %p374 = por %p372, %p373
      %p375 = scmp.ne.s32.totalorder %s367, %s369
      %p376 = scmp.eq.s32.totalorder %s44, 1
      %p377 = por %p375, %p376
      %p378 = scmp.ne.s32.totalorder %s369, %s370
      %p379 = scmp.eq.s32.totalorder %s44, 0
      %p380 = por %p378, %p379
      %p381 = scmp.ne.s32.totalorder %s369, %s370
      %p382 = scmp.eq.s32.totalorder %s45, 1
      %p383 = por %p381, %p382
      %p385 = scmp.ne.s32.totalorder %s370, %s384
      %p386 = scmp.eq.s32.totalorder %s45, 0
      %p387 = por %p385, %p386
      %s389 = sadd.s32 %s388, 1
      %p392 = scmp.eq.s32.totalorder %s39, 1
      %p393 = scmp.ne.s32.totalorder %s388, %s390
      %p394 = scmp.eq.s32.totalorder %s39, 0
      %p395 = por %p393, %p394
      %p396 = scmp.ne.s32.totalorder %s388, %s390
      %p397 = scmp.eq.s32.totalorder %s44, 1
      %p398 = por %p396, %p397
      %p399 = scmp.ne.s32.totalorder %s390, %s391
      %p400 = scmp.eq.s32.totalorder %s44, 0
      %p401 = por %p399, %p400
      %p402 = scmp.ne.s32.totalorder %s390, %s391
      %p403 = scmp.eq.s32.totalorder %s45, 1
      %p404 = por %p402, %p403
      %p406 = scmp.ne.s32.totalorder %s391, %s405
      %p407 = scmp.eq.s32.totalorder %s45, 0
      %p408 = por %p406, %p407
      %s410 = sadd.s32 %s409, 1
      %p413 = scmp.eq.s32.totalorder %s39, 1
      %p414 = scmp.ne.s32.totalorder %s409, %s411
      %p415 = scmp.eq.s32.totalorder %s39, 0
      %p416 = por %p414, %p415
      %p417 = scmp.ne.s32.totalorder %s409, %s411
      %p418 = scmp.eq.s32.totalorder %s44, 1
      %p419 = por %p417, %p418
      %p420 = scmp.ne.s32.totalorder %s411, %s412
      %p421 = scmp.eq.s32.totalorder %s44, 0
      %p422 = por %p420, %p421
      %p423 = scmp.ne.s32.totalorder %s411, %s412
      %p424 = scmp.eq.s32.totalorder %s45, 1
      %p425 = por %p423, %p424
      %p427 = scmp.ne.s32.totalorder %s412, %s426
      %p428 = scmp.eq.s32.totalorder %s45, 0
      %p429 = por %p427, %p428
      %s430 = ssub.s32 %s39, %s46
      %p431 = scmp.eq.s32.totalorder %s430, 0
      %s433 = sadd.s32 %s432, 1
      %s434 = scalar_select %p431, %s432, %s433
      %p437 = pneg %p431
      %p438 = scmp.eq.s32.totalorder %s39, 1
      %p439 = por %p437, %p438
      %p440 = scmp.ne.s32.totalorder %s432, %s435
      %p441 = scmp.eq.s32.totalorder %s39, 0
      %p442 = por %p440, %p441
      %p443 = scmp.ne.s32.totalorder %s432, %s435
      %p444 = scmp.eq.s32.totalorder %s44, 1
      %p445 = por %p443, %p444
      %p446 = scmp.ne.s32.totalorder %s435, %s436
      %p447 = scmp.eq.s32.totalorder %s44, 0
      %p448 = por %p446, %p447
      %p449 = scmp.ne.s32.totalorder %s435, %s436
      %p450 = scmp.eq.s32.totalorder %s45, 1
      %p451 = por %p449, %p450
      %p453 = scmp.ne.s32.totalorder %s436, %s452
      %p454 = scmp.eq.s32.totalorder %s45, 0
      %p455 = por %p453, %p454
      %p456 = scmp.le.s32.totalorder 1, %s39
      %p457 = scmp.lt.s32.totalorder %s39, 3
      %p458 = pnand %p456, %p457
      %p459 = pneg %p458
      // Predicated region
      $region9: #{tpu_custom_call.1} parent=5 // pred_check
        _
      $region10: #{tpu_custom_call.1} parent=5 // pred_check_branch
        %461 = sbr.rel (%p458) target = $region12
      $region11: #{tpu_custom_call.1} parent=5 // pred_region
        %s462 = ssub.s32 %s39, 1
        // Predicated region
        $region13: #{tpu_custom_call.1} parent=11 // pred_check
          %p463 = pneg %p86
        $region14: #{tpu_custom_call.1} parent=11 // pred_check_branch
          %465 = sbr.rel (%p463) target = $region16
        $region15: #{tpu_custom_call.1} parent=11 // pred_region
          %s467 = ssub.s32 384, 384
          %468 = vsyncadd [#allocation7], %s467
          %s469 = sshll.u32 [#allocation6], 4
          %s470 = int_to_ptr.vmem [resolvable:$true] %s469
          %475 = dma.hbm_to_vmem [thread:$0]  %s1, 384, %s470, [#allocation7], 128, 128, 8
        $region16: #{tpu_custom_call.1} parent=11 // pred_fallthru
          _
        // Predicated region
        $region17: #{tpu_custom_call.1} parent=11 // pred_check
          %p476 = pneg %p107
        $region18: #{tpu_custom_call.1} parent=11 // pred_check_branch
          %478 = sbr.rel (%p476) target = $region20
        $region19: #{tpu_custom_call.1} parent=11 // pred_region
          %s480 = ssub.s32 256, 256
          %481 = vsyncadd [#allocation7], %s480
          %s482 = sshll.u32 [#allocation8], 4
          %s483 = int_to_ptr.vmem [resolvable:$true] %s482
          %488 = dma.hbm_to_vmem [thread:$0]  %s2, 256, %s483, [#allocation7], 64, 64, 4
        $region20: #{tpu_custom_call.1} parent=11 // pred_fallthru
          _
        // Predicated region
        $region21: #{tpu_custom_call.1} parent=11 // pred_check
          %p489 = pneg %p128
        $region22: #{tpu_custom_call.1} parent=11 // pred_check_branch
          %491 = sbr.rel (%p489) target = $region24
        $region23: #{tpu_custom_call.1} parent=11 // pred_region
          %s493 = ssub.s32 16, 16
          %494 = vsyncadd [#allocation10], %s493
          %s496 = sshll.u32 [#allocation9], 4
          %s497 = int_to_ptr.vmem [resolvable:$true] %s496
          %499 = dma.hbm_to_vmem [thread:$0]  %s3, 16, %s497, [#allocation10]
        $region24: #{tpu_custom_call.1} parent=11 // pred_fallthru
          _
        // Predicated region
        $region25: #{tpu_custom_call.1} parent=11 // pred_check
          %p500 = pneg %p149
        $region26: #{tpu_custom_call.1} parent=11 // pred_check_branch
          %502 = sbr.rel (%p500) target = $region28
        $region27: #{tpu_custom_call.1} parent=11 // pred_region
          %s504 = ssub.s32 256, 256
          %505 = vsyncadd [#allocation10], %s504
          %s506 = sshll.u32 [#allocation11], 4
          %s507 = int_to_ptr.vmem [resolvable:$true] %s506
          %512 = dma.hbm_to_vmem [thread:$0]  %s4, 256, %s507, [#allocation10], 64, 64, 4
        $region28: #{tpu_custom_call.1} parent=11 // pred_fallthru
          _
        // Predicated region
        $region29: #{tpu_custom_call.1} parent=11 // pred_check
          %p513 = pneg %p170
        $region30: #{tpu_custom_call.1} parent=11 // pred_check_branch
          %515 = sbr.rel (%p513) target = $region32
        $region31: #{tpu_custom_call.1} parent=11 // pred_region
          %s517 = ssub.s32 16, 16
          %518 = vsyncadd [#allocation13], %s517
          %s520 = sshll.u32 [#allocation12], 4
          %s521 = int_to_ptr.vmem [resolvable:$true] %s520
          %523 = dma.hbm_to_vmem [thread:$0]  %s5, 16, %s521, [#allocation13]
        $region32: #{tpu_custom_call.1} parent=11 // pred_fallthru
          _
        // Predicated region
        $region33: #{tpu_custom_call.1} parent=11 // pred_check
          %p524 = pneg %p191
        $region34: #{tpu_custom_call.1} parent=11 // pred_check_branch
          %526 = sbr.rel (%p524) target = $region36
        $region35: #{tpu_custom_call.1} parent=11 // pred_region
          %s528 = ssub.s32 256, 256
          %529 = vsyncadd [#allocation13], %s528
          %s530 = sshll.u32 [#allocation14], 4
          %s531 = int_to_ptr.vmem [resolvable:$true] %s530
          %536 = dma.hbm_to_vmem [thread:$0]  %s6, 256, %s531, [#allocation13], 64, 64, 4
        $region36: #{tpu_custom_call.1} parent=11 // pred_fallthru
          _
        // Predicated region
        $region37: #{tpu_custom_call.1} parent=11 // pred_check
          %p537 = pneg %p212
        $region38: #{tpu_custom_call.1} parent=11 // pred_check_branch
          %539 = sbr.rel (%p537) target = $region40
        $region39: #{tpu_custom_call.1} parent=11 // pred_region
          %s541 = ssub.s32 16, 16
          %542 = vsyncadd [#allocation16], %s541
          %s544 = sshll.u32 [#allocation15], 4
          %s545 = int_to_ptr.vmem [resolvable:$true] %s544
          %547 = dma.hbm_to_vmem [thread:$0]  %s7, 16, %s545, [#allocation16]
        $region40: #{tpu_custom_call.1} parent=11 // pred_fallthru
          _
        // Predicated region
        $region41: #{tpu_custom_call.1} parent=11 // pred_check
          %p548 = pneg %p233
        $region42: #{tpu_custom_call.1} parent=11 // pred_check_branch
          %550 = sbr.rel (%p548) target = $region44
        $region43: #{tpu_custom_call.1} parent=11 // pred_region
          %s552 = ssub.s32 256, 256
          %553 = vsyncadd [#allocation16], %s552
          %s554 = sshll.u32 [#allocation17], 4
          %s555 = int_to_ptr.vmem [resolvable:$true] %s554
          %560 = dma.hbm_to_vmem [thread:$0]  %s8, 256, %s555, [#allocation16], 64, 64, 4
        $region44: #{tpu_custom_call.1} parent=11 // pred_fallthru
          _
        // Predicated region
        $region45: #{tpu_custom_call.1} parent=11 // pred_check
          %p561 = pneg %p254
        $region46: #{tpu_custom_call.1} parent=11 // pred_check_branch
          %563 = sbr.rel (%p561) target = $region48
        $region47: #{tpu_custom_call.1} parent=11 // pred_region
          %s565 = ssub.s32 16, 16
          %566 = vsyncadd [#allocation19], %s565
          %s568 = sshll.u32 [#allocation18], 4
          %s569 = int_to_ptr.vmem [resolvable:$true] %s568
          %571 = dma.hbm_to_vmem [thread:$0]  %s9, 16, %s569, [#allocation19]
        $region48: #{tpu_custom_call.1} parent=11 // pred_fallthru
          _
        // Predicated region
        $region49: #{tpu_custom_call.1} parent=11 // pred_check
          %p572 = pneg %p275
        $region50: #{tpu_custom_call.1} parent=11 // pred_check_branch
          %574 = sbr.rel (%p572) target = $region52
        $region51: #{tpu_custom_call.1} parent=11 // pred_region
          %s576 = ssub.s32 16, 16
          %577 = vsyncadd [#allocation19], %s576
          %s579 = sshll.u32 [#allocation20], 4
          %s580 = int_to_ptr.vmem [resolvable:$true] %s579
          %582 = dma.hbm_to_vmem [thread:$0]  %s10, 16, %s580, [#allocation19]
        $region52: #{tpu_custom_call.1} parent=11 // pred_fallthru
          _
        // Predicated region
        $region53: #{tpu_custom_call.1} parent=11 // pred_check
          %p583 = pneg %p296
        $region54: #{tpu_custom_call.1} parent=11 // pred_check_branch
          %585 = sbr.rel (%p583) target = $region56
        $region55: #{tpu_custom_call.1} parent=11 // pred_region
          %s587 = ssub.s32 16, 16
          %588 = vsyncadd [#allocation22], %s587
          %s590 = sshll.u32 [#allocation21], 4
          %s591 = int_to_ptr.vmem [resolvable:$true] %s590
          %593 = dma.hbm_to_vmem [thread:$0]  %s11, 16, %s591, [#allocation22]
        $region56: #{tpu_custom_call.1} parent=11 // pred_fallthru
          _
        // Predicated region
        $region57: #{tpu_custom_call.1} parent=11 // pred_check
          %p594 = pneg %p317
        $region58: #{tpu_custom_call.1} parent=11 // pred_check_branch
          %596 = sbr.rel (%p594) target = $region60
        $region59: #{tpu_custom_call.1} parent=11 // pred_region
          %s598 = ssub.s32 256, 256
          %599 = vsyncadd [#allocation22], %s598
          %s600 = sshll.u32 [#allocation23], 4
          %s601 = int_to_ptr.vmem [resolvable:$true] %s600
          %606 = dma.hbm_to_vmem [thread:$0]  %s12, 256, %s601, [#allocation22], 64, 64, 4
        $region60: #{tpu_custom_call.1} parent=11 // pred_fallthru
          _
        // Predicated region
        $region61: #{tpu_custom_call.1} parent=11 // pred_check
          %p607 = pneg %p338
        $region62: #{tpu_custom_call.1} parent=11 // pred_check_branch
          %609 = sbr.rel (%p607) target = $region64
        $region63: #{tpu_custom_call.1} parent=11 // pred_region
          %s611 = ssub.s32 16, 16
          %612 = vsyncadd [#allocation25], %s611
          %s614 = sshll.u32 [#allocation24], 4
          %s615 = int_to_ptr.vmem [resolvable:$true] %s614
          %617 = dma.hbm_to_vmem [thread:$0]  %s13, 16, %s615, [#allocation25]
        $region64: #{tpu_custom_call.1} parent=11 // pred_fallthru
          _
        // Predicated region
        $region65: #{tpu_custom_call.1} parent=11 // pred_check
          %p618 = pneg %p359
        $region66: #{tpu_custom_call.1} parent=11 // pred_check_branch
          %620 = sbr.rel (%p618) target = $region68
        $region67: #{tpu_custom_call.1} parent=11 // pred_region
          %s622 = ssub.s32 1024, 1024
          %623 = vsyncadd [#allocation25], %s622
          %s624 = sshll.u32 [#allocation26], 4
          %s625 = int_to_ptr.vmem [resolvable:$true] %s624
          %630 = dma.hbm_to_vmem [thread:$0]  %s14, 1024, %s625, [#allocation25], 64, 64, 4
        $region68: #{tpu_custom_call.1} parent=11 // pred_fallthru
          _
        // Predicated region
        $region69: #{tpu_custom_call.1} parent=11 // pred_check
          %p631 = pneg %p380
        $region70: #{tpu_custom_call.1} parent=11 // pred_check_branch
          %633 = sbr.rel (%p631) target = $region72
        $region71: #{tpu_custom_call.1} parent=11 // pred_region
          %s635 = ssub.s32 16, 16
          %636 = vsyncadd [#allocation28], %s635
          %s638 = sshll.u32 [#allocation27], 4
          %s639 = int_to_ptr.vmem [resolvable:$true] %s638
          %641 = dma.hbm_to_vmem [thread:$0]  %s15, 16, %s639, [#allocation28]
        $region72: #{tpu_custom_call.1} parent=11 // pred_fallthru
          _
        // Predicated region
        $region73: #{tpu_custom_call.1} parent=11 // pred_check
          %p642 = pneg %p401
        $region74: #{tpu_custom_call.1} parent=11 // pred_check_branch
          %644 = sbr.rel (%p642) target = $region76
        $region75: #{tpu_custom_call.1} parent=11 // pred_region
          %s646 = ssub.s32 16, 16
          %647 = vsyncadd [#allocation28], %s646
          %s649 = sshll.u32 [#allocation29], 4
          %s650 = int_to_ptr.vmem [resolvable:$true] %s649
          %652 = dma.hbm_to_vmem [thread:$0]  %s16, 16, %s650, [#allocation28]
        $region76: #{tpu_custom_call.1} parent=11 // pred_fallthru
          _
        // Predicated region
        $region77: #{tpu_custom_call.1} parent=11 // pred_check
          %p653 = pneg %p422
        $region78: #{tpu_custom_call.1} parent=11 // pred_check_branch
          %655 = sbr.rel (%p653) target = $region80
        $region79: #{tpu_custom_call.1} parent=11 // pred_region
          %s657 = ssub.s32 16, 16
          %658 = vsyncadd [#allocation31], %s657
          %s660 = sshll.u32 [#allocation30], 4
          %s661 = int_to_ptr.vmem [resolvable:$true] %s660
          %663 = dma.hbm_to_vmem [thread:$0]  %s17, 16, %s661, [#allocation31]
        $region80: #{tpu_custom_call.1} parent=11 // pred_fallthru
          _
      $region12: #{tpu_custom_call.1} parent=5 // pred_fallthru
        _
      %p664 = scmp.lt.s32.totalorder %s39, 2
      // Predicated region
      $region81: #{tpu_custom_call.1} parent=5 // pred_check
        %p665 = pneg %p664
      $region82: #{tpu_custom_call.1} parent=5 // pred_check_branch
        %667 = sbr.rel (%p665) target = $region84
      $region83: #{tpu_custom_call.1} parent=5 // pred_region
        // Predicated region
        $region85: #{tpu_custom_call.1} parent=83 // pred_check
          %p668 = pneg %p59
        $region86: #{tpu_custom_call.1} parent=83 // pred_check_branch
          %670 = sbr.rel (%p668) target = $region88
        $region87: #{tpu_custom_call.1} parent=83 // pred_region
          %s671 = sand.u32 %s49, 1
          %s672 = scalar_lea.sflag [#allocation4], %s671
          %s673 = sand.u32 %s49, 1
          %s674 = smul.addr %s673, 8
          %s675 = scalar_lea.vmem [#allocation3], %s674
          %s677 = ssub.s32 128, 128
          %678 = vsyncadd %s672, %s677
          %s679 = smul.addr %s39, 128
          %s680 = scalar_lea.hbm %s0, %s679
          %s682 = sshll.u32 %s675, 4
          %s683 = int_to_ptr.vmem [resolvable:$true] %s682
          %685 = dma.hbm_to_vmem [thread:$0]  %s680, 128, %s683, %s672
        $region88: #{tpu_custom_call.1} parent=83 // pred_fallthru
          _
      $region84: #{tpu_custom_call.1} parent=5 // pred_fallthru
        _
      %p686 = scmp.le.s32.totalorder 1, %s39
      %p687 = scmp.lt.s32.totalorder %s39, 3
      %p688 = pnand %p686, %p687
      %p689 = pneg %p688
      // Predicated region
      $region89: #{tpu_custom_call.1} parent=5 // pred_check
        _
      $region90: #{tpu_custom_call.1} parent=5 // pred_check_branch
        %691 = sbr.rel (%p688) target = $region92
      $region91: #{tpu_custom_call.1} parent=5 // pred_region
        %s692 = ssub.s32 %s39, 1
        %s693 = sand.u32 %s52, 1
        %s694 = scalar_lea.sflag [#allocation4], %s693
        %s695 = sand.u32 %s52, 1
        %s696 = smul.addr %s695, 8
        %s697 = scalar_lea.vmem [#allocation3], %s696
        // Predicated region
        $region93: #{tpu_custom_call.1} parent=91 // pred_check
          %p698 = pneg %p65
        $region94: #{tpu_custom_call.1} parent=91 // pred_check_branch
          %700 = sbr.rel (%p698) target = $region96
        $region95: #{tpu_custom_call.1} parent=91 // pred_region
          %701 = dma.done %s694, 128
        $region96: #{tpu_custom_call.1} parent=91 // pred_fallthru
          _
        // Predicated region
        $region97: #{tpu_custom_call.1} parent=91 // pred_check
          %p702 = pneg %p86
        $region98: #{tpu_custom_call.1} parent=91 // pred_check_branch
          %704 = sbr.rel (%p702) target = $region100
        $region99: #{tpu_custom_call.1} parent=91 // pred_region
          %705 = dma.done [#allocation7], 384
        $region100: #{tpu_custom_call.1} parent=91 // pred_fallthru
          _
        // Predicated region
        $region101: #{tpu_custom_call.1} parent=91 // pred_check
          %p706 = pneg %p107
        $region102: #{tpu_custom_call.1} parent=91 // pred_check_branch
          %708 = sbr.rel (%p706) target = $region104
        $region103: #{tpu_custom_call.1} parent=91 // pred_region
          %709 = dma.done [#allocation7], 256
        $region104: #{tpu_custom_call.1} parent=91 // pred_fallthru
          _
        // Predicated region
        $region105: #{tpu_custom_call.1} parent=91 // pred_check
          %p710 = pneg %p128
        $region106: #{tpu_custom_call.1} parent=91 // pred_check_branch
          %712 = sbr.rel (%p710) target = $region108
        $region107: #{tpu_custom_call.1} parent=91 // pred_region
          %713 = dma.done [#allocation10], 16
        $region108: #{tpu_custom_call.1} parent=91 // pred_fallthru
          _
        // Predicated region
        $region109: #{tpu_custom_call.1} parent=91 // pred_check
          %p714 = pneg %p149
        $region110: #{tpu_custom_call.1} parent=91 // pred_check_branch
          %716 = sbr.rel (%p714) target = $region112
        $region111: #{tpu_custom_call.1} parent=91 // pred_region
          %717 = dma.done [#allocation10], 256
        $region112: #{tpu_custom_call.1} parent=91 // pred_fallthru
          _
        // Predicated region
        $region113: #{tpu_custom_call.1} parent=91 // pred_check
          %p718 = pneg %p170
        $region114: #{tpu_custom_call.1} parent=91 // pred_check_branch
          %720 = sbr.rel (%p718) target = $region116
        $region115: #{tpu_custom_call.1} parent=91 // pred_region
          %721 = dma.done [#allocation13], 16
        $region116: #{tpu_custom_call.1} parent=91 // pred_fallthru
          _
        // Predicated region
        $region117: #{tpu_custom_call.1} parent=91 // pred_check
          %p722 = pneg %p191
        $region118: #{tpu_custom_call.1} parent=91 // pred_check_branch
          %724 = sbr.rel (%p722) target = $region120
        $region119: #{tpu_custom_call.1} parent=91 // pred_region
          %725 = dma.done [#allocation13], 256
        $region120: #{tpu_custom_call.1} parent=91 // pred_fallthru
          _
        // Predicated region
        $region121: #{tpu_custom_call.1} parent=91 // pred_check
          %p726 = pneg %p212
        $region122: #{tpu_custom_call.1} parent=91 // pred_check_branch
          %728 = sbr.rel (%p726) target = $region124
        $region123: #{tpu_custom_call.1} parent=91 // pred_region
          %729 = dma.done [#allocation16], 16
        $region124: #{tpu_custom_call.1} parent=91 // pred_fallthru
          _
        // Predicated region
        $region125: #{tpu_custom_call.1} parent=91 // pred_check
          %p730 = pneg %p233
        $region126: #{tpu_custom_call.1} parent=91 // pred_check_branch
          %732 = sbr.rel (%p730) target = $region128
        $region127: #{tpu_custom_call.1} parent=91 // pred_region
          %733 = dma.done [#allocation16], 256
        $region128: #{tpu_custom_call.1} parent=91 // pred_fallthru
          _
        // Predicated region
        $region129: #{tpu_custom_call.1} parent=91 // pred_check
          %p734 = pneg %p254
        $region130: #{tpu_custom_call.1} parent=91 // pred_check_branch
          %736 = sbr.rel (%p734) target = $region132
        $region131: #{tpu_custom_call.1} parent=91 // pred_region
          %737 = dma.done [#allocation19], 16
        $region132: #{tpu_custom_call.1} parent=91 // pred_fallthru
          _
        // Predicated region
        $region133: #{tpu_custom_call.1} parent=91 // pred_check
          %p738 = pneg %p275
        $region134: #{tpu_custom_call.1} parent=91 // pred_check_branch
          %740 = sbr.rel (%p738) target = $region136
        $region135: #{tpu_custom_call.1} parent=91 // pred_region
          %741 = dma.done [#allocation19], 16
        $region136: #{tpu_custom_call.1} parent=91 // pred_fallthru
          _
        // Predicated region
        $region137: #{tpu_custom_call.1} parent=91 // pred_check
          %p742 = pneg %p296
        $region138: #{tpu_custom_call.1} parent=91 // pred_check_branch
          %744 = sbr.rel (%p742) target = $region140
        $region139: #{tpu_custom_call.1} parent=91 // pred_region
          %745 = dma.done [#allocation22], 16
        $region140: #{tpu_custom_call.1} parent=91 // pred_fallthru
          _
        // Predicated region
        $region141: #{tpu_custom_call.1} parent=91 // pred_check
          %p746 = pneg %p317
        $region142: #{tpu_custom_call.1} parent=91 // pred_check_branch
          %748 = sbr.rel (%p746) target = $region144
        $region143: #{tpu_custom_call.1} parent=91 // pred_region
          %749 = dma.done [#allocation22], 256
        $region144: #{tpu_custom_call.1} parent=91 // pred_fallthru
          _
        // Predicated region
        $region145: #{tpu_custom_call.1} parent=91 // pred_check
          %p750 = pneg %p338
        $region146: #{tpu_custom_call.1} parent=91 // pred_check_branch
          %752 = sbr.rel (%p750) target = $region148
        $region147: #{tpu_custom_call.1} parent=91 // pred_region
          %753 = dma.done [#allocation25], 16
        $region148: #{tpu_custom_call.1} parent=91 // pred_fallthru
          _
        // Predicated region
        $region149: #{tpu_custom_call.1} parent=91 // pred_check
          %p754 = pneg %p359
        $region150: #{tpu_custom_call.1} parent=91 // pred_check_branch
          %756 = sbr.rel (%p754) target = $region152
        $region151: #{tpu_custom_call.1} parent=91 // pred_region
          %757 = dma.done [#allocation25], 1024
        $region152: #{tpu_custom_call.1} parent=91 // pred_fallthru
          _
        // Predicated region
        $region153: #{tpu_custom_call.1} parent=91 // pred_check
          %p758 = pneg %p380
        $region154: #{tpu_custom_call.1} parent=91 // pred_check_branch
          %760 = sbr.rel (%p758) target = $region156
        $region155: #{tpu_custom_call.1} parent=91 // pred_region
          %761 = dma.done [#allocation28], 16
        $region156: #{tpu_custom_call.1} parent=91 // pred_fallthru
          _
        // Predicated region
        $region157: #{tpu_custom_call.1} parent=91 // pred_check
          %p762 = pneg %p401
        $region158: #{tpu_custom_call.1} parent=91 // pred_check_branch
          %764 = sbr.rel (%p762) target = $region160
        $region159: #{tpu_custom_call.1} parent=91 // pred_region
          %765 = dma.done [#allocation28], 16
        $region160: #{tpu_custom_call.1} parent=91 // pred_fallthru
          _
        // Predicated region
        $region161: #{tpu_custom_call.1} parent=91 // pred_check
          %p766 = pneg %p422
        $region162: #{tpu_custom_call.1} parent=91 // pred_check_branch
          %768 = sbr.rel (%p766) target = $region164
        $region163: #{tpu_custom_call.1} parent=91 // pred_region
          %769 = dma.done [#allocation31], 16
        $region164: #{tpu_custom_call.1} parent=91 // pred_fallthru
          _
        %s770 = sand.u32 %s52, 1
        %s771 = scalar_lea.sflag [#allocation4], %s770
        %s772 = sand.u32 %s52, 1
        %s773 = smul.addr %s772, 8
        %s774 = scalar_lea.vmem [#allocation3], %s773
        %p775 = pneg %p65
        %p776 = pneg %p62
        %p777 = pneg %p86
        %p778 = pneg %p83
        %p779 = pneg %p107
        %p780 = pneg %p104
        %p781 = pneg %p128
        %p782 = pneg %p125
        %p783 = pneg %p149
        %p784 = pneg %p146
        %p785 = pneg %p170
        %p786 = pneg %p167
        %p787 = pneg %p191
        %p788 = pneg %p188
        %p789 = pneg %p212
        %p790 = pneg %p209
        %p791 = pneg %p233
        %p792 = pneg %p230
        %p793 = pneg %p254
        %p794 = pneg %p251
        %p795 = pneg %p275
        %p796 = pneg %p272
        %p797 = pneg %p296
        %p798 = pneg %p293
        %p799 = pneg %p317
        %p800 = pneg %p314
        %p801 = pneg %p338
        %p802 = pneg %p335
        %p803 = pneg %p359
        %p804 = pneg %p356
        %p805 = pneg %p380
        %p806 = pneg %p377
        %p807 = pneg %p401
        %p808 = pneg %p398
        %p809 = pneg %p422
        %p810 = pneg %p419
        %p811 = pneg %p448
        %p812 = pneg %p445
        %s813 = sand.u32 %s435, 1
        %s814 = scalar_lea.sflag [#allocation5], %s813
        %s815 = sand.u32 %s435, 1
        %s816 = smul.addr %s815, 8
        %s817 = scalar_lea.vmem [#allocation32], %s816
        %v819 = vld [vmem:[%s697] sm:$0xff]
        %vm820 = vcmask 261120
        %821 = vst.msk [vmem:[#allocation2] sm:$0xff] %vm820, %v819
        %v822 = vld [vmem:[#allocation6] sm:$0xff]
        %v823 = vld [vmem:[#allocation6 + $0x8] sm:$0xff]
        %v824 = vld [vmem:[#allocation6 + $0x10] sm:$0xf]
        %825 = vst.msk [vmem:[#allocation2 + $0x8] sm:$0xff] %vm820, %v822
        %826 = vst.msk [vmem:[#allocation2 + $0x10] sm:$0xff] %vm820, %v823
        %vm827 = vcmask 257024
        %828 = vst.msk [vmem:[#allocation2 + $0x18] sm:$0xf] %vm827, %v824
        %v829 = vld [vmem:[#allocation2] sm:$0xff]
        %v830 = vld [vmem:[#allocation2 + $0x8] sm:$0xff]
        %v831 = vld [vmem:[#allocation2 + $0x10] sm:$0xff]
        %v832 = vld [vmem:[#allocation2 + $0x18] sm:$0xf]
        %v833 = vpack.c.bf16 %v830, %v829
        %v834 = vpack.c.bf16 %v832, %v831
        %v835 = vld [vmem:[#allocation8] sm:$0xf]
        %v836 = vld [vmem:[#allocation8 + $0x4] sm:$0xf]
        %v837 = vld [vmem:[#allocation8 + $0x8] sm:$0xf]
        %v838 = vld [vmem:[#allocation8 + $0xc] sm:$0xf]
        %v839 = vld [vmem:[#allocation9] sm:$0x1]
        %v841 = vlaneseq
        %v842 = vshrl.u32 %v841, 7
        %v843 = vsub.s32 0, %v842
        %v844 = vrot.slane %v839, %v843
        %v850 = vunpack.c.l.b16 %v835
        %v851 = vunpack.c.l.b16 %v836
        %v852 = vunpack.c.l.b16 %v837
        %v853 = vunpack.c.l.b16 %v838
        %v854 = vpack.c.b16 %v851, %v850
        %v855 = vpack.c.b16 %v853, %v852
        %v859 = vsel %vm820, %v833, 0
        %v862 = vsel %vm820, %v834, 0
        %864 = vmatprep.subr.bf16.mxu0 0
        %865 = vmatpush1.bf16.msra.mxu0 %v854
        %866 = vmatprep.subr.bf16.mxu0 0
        %867 = vmatpush1.bf16.msra.mxu0 %v855
        %868 = vmatprep.subr.bf16.mxu0 0
        %869 = vmatpush1.bf16.msra.mxu0 0
        %870 = vmatprep.subr.bf16.mxu0 0
        %871 = vmatpush1.bf16.msra.mxu0 0
        %872 = vmatprep.subr.bf16.mxu0 0
        %873 = vmatpush1.bf16.msra.mxu0 0
        %874 = vmatprep.subr.bf16.mxu0 0
        %875 = vmatpush1.bf16.msra.mxu0 0
        %876 = vmatprep.subr.bf16.mxu0 0
        %877 = vmatpush1.bf16.msra.mxu0 0
        %878 = vmatprep.subr.bf16.mxu0 0
        %879 = vmatpush1.bf16.msra.mxu0 0
        %880 = vmatprep.subr.bf16.mxu0 0
        %881 = vmatpush1.bf16.msra.mxu0 0
        %882 = vmatprep.subr.bf16.mxu0 0
        %883 = vmatpush1.bf16.msra.mxu0 0
        %884 = vmatprep.subr.bf16.mxu0 0
        %885 = vmatpush1.bf16.msra.mxu0 0
        %886 = vmatprep.subr.bf16.mxu0 0
        %887 = vmatpush1.bf16.msra.mxu0 0
        %888 = vmatprep.subr.bf16.mxu0 0
        %889 = vmatpush1.bf16.msra.mxu0 0
        %890 = vmatprep.subr.bf16.mxu0 0
        %891 = vmatpush1.bf16.msra.mxu0 0
        %892 = vmatprep.subr.bf16.mxu0 0
        %893 = vmatpush1.bf16.msra.mxu0 0
        %894 = vmatprep.subr.bf16.mxu0 0
        %895 = vmatpush1.bf16.msra.mxu0 0
        %896 = vmatprep.mubr.bf16.mxu0 0
        %897 = vmatmul.mubr.bf16.gmra.mrb[0].mxu0 %v859
        %v898 = vpop.f32.mrb[0].mxu0
        %v899 = vadd.f32 %v844, %v898
        %v900 = vpop.f32.mrb[0].mxu0
        %v901 = vpop.f32.mrb[0].mxu0
        %v902 = vadd.f32 %v844, %v901
        %v903 = vpop.f32.mrb[0].mxu0
        %904 = vmatprep.mubr.bf16.mxu0 0
        %905 = vmatmul.mubr.bf16.gmra.mrb[0].mxu0 %v862
        %v906 = vpop.f32.mrb[0].mxu0
        %v907 = vadd.f32 %v844, %v906
        %v908 = vpop.f32.mrb[0].mxu0
        %v909 = vpop.f32.mrb[0].mxu0
        %v910 = vadd.f32 %v844, %v909
        %v911 = vpop.f32.mrb[0].mxu0
        %912 = vdwg.mxu0
        %v913 = vld [vmem:[#allocation11] sm:$0xf]
        %v914 = vld [vmem:[#allocation11 + $0x4] sm:$0xf]
        %v915 = vld [vmem:[#allocation11 + $0x8] sm:$0xf]
        %v916 = vld [vmem:[#allocation11 + $0xc] sm:$0xf]
        %v917 = vld [vmem:[#allocation12] sm:$0x1]
        %v919 = vlaneseq
        %v920 = vshrl.u32 %v919, 7
        %v921 = vsub.s32 0, %v920
        %v922 = vrot.slane %v917, %v921
        %v928 = vunpack.c.l.b16 %v913
        %v929 = vunpack.c.l.b16 %v914
        %v930 = vunpack.c.l.b16 %v915
        %v931 = vunpack.c.l.b16 %v916
        %v932 = vpack.c.b16 %v929, %v928
        %v933 = vpack.c.b16 %v931, %v930
        %936 = vmatprep.subr.bf16.mxu0 0
        %937 = vmatpush1.bf16.msra.mxu0 %v932
        %938 = vmatprep.subr.bf16.mxu0 0
        %939 = vmatpush1.bf16.msra.mxu0 %v933
        %940 = vmatprep.subr.bf16.mxu0 0
        %941 = vmatpush1.bf16.msra.mxu0 0
        %942 = vmatprep.subr.bf16.mxu0 0
        %943 = vmatpush1.bf16.msra.mxu0 0
        %944 = vmatprep.subr.bf16.mxu0 0
        %945 = vmatpush1.bf16.msra.mxu0 0
        %946 = vmatprep.subr.bf16.mxu0 0
        %947 = vmatpush1.bf16.msra.mxu0 0
        %948 = vmatprep.subr.bf16.mxu0 0
        %949 = vmatpush1.bf16.msra.mxu0 0
        %950 = vmatprep.subr.bf16.mxu0 0
        %951 = vmatpush1.bf16.msra.mxu0 0
        %952 = vmatprep.subr.bf16.mxu0 0
        %953 = vmatpush1.bf16.msra.mxu0 0
        %954 = vmatprep.subr.bf16.mxu0 0
        %955 = vmatpush1.bf16.msra.mxu0 0
        %956 = vmatprep.subr.bf16.mxu0 0
        %957 = vmatpush1.bf16.msra.mxu0 0
        %958 = vmatprep.subr.bf16.mxu0 0
        %959 = vmatpush1.bf16.msra.mxu0 0
        %960 = vmatprep.subr.bf16.mxu0 0
        %961 = vmatpush1.bf16.msra.mxu0 0
        %962 = vmatprep.subr.bf16.mxu0 0
        %963 = vmatpush1.bf16.msra.mxu0 0
        %964 = vmatprep.subr.bf16.mxu0 0
        %965 = vmatpush1.bf16.msra.mxu0 0
        %966 = vmatprep.subr.bf16.mxu0 0
        %967 = vmatpush1.bf16.msra.mxu0 0
        %968 = vmatprep.mubr.bf16.mxu0 0
        %969 = vmatmul.mubr.bf16.gmra.mrb[0].mxu0 %v859
        %v970 = vpop.f32.mrb[0].mxu0
        %v971 = vadd.f32 %v922, %v970
        %v972 = vpop.f32.mrb[0].mxu0
        %v973 = vpop.f32.mrb[0].mxu0
        %v974 = vadd.f32 %v922, %v973
        %v975 = vpop.f32.mrb[0].mxu0
        %976 = vmatprep.mubr.bf16.mxu0 0
        %977 = vmatmul.mubr.bf16.gmra.mrb[0].mxu0 %v862
        %v978 = vpop.f32.mrb[0].mxu0
        %v979 = vadd.f32 %v922, %v978
        %v980 = vpop.f32.mrb[0].mxu0
        %v981 = vpop.f32.mrb[0].mxu0
        %v982 = vadd.f32 %v922, %v981
        %v983 = vpop.f32.mrb[0].mxu0
        %984 = vdwg.mxu0
        %v985 = vld [vmem:[#allocation14] sm:$0xf]
        %v986 = vld [vmem:[#allocation14 + $0x4] sm:$0xf]
        %v987 = vld [vmem:[#allocation14 + $0x8] sm:$0xf]
        %v988 = vld [vmem:[#allocation14 + $0xc] sm:$0xf]
        %v989 = vld [vmem:[#allocation15] sm:$0x1]
        %v991 = vlaneseq
        %v992 = vshrl.u32 %v991, 7
        %v993 = vsub.s32 0, %v992
        %v994 = vrot.slane %v989, %v993
        %v1000 = vunpack.c.l.b16 %v985
        %v1001 = vunpack.c.l.b16 %v986
        %v1002 = vunpack.c.l.b16 %v987
        %v1003 = vunpack.c.l.b16 %v988
        %v1004 = vpack.c.b16 %v1001, %v1000
        %v1005 = vpack.c.b16 %v1003, %v1002
        %1008 = vmatprep.subr.bf16.mxu0 0
        %1009 = vmatpush1.bf16.msra.mxu0 %v1004
        %1010 = vmatprep.subr.bf16.mxu0 0
        %1011 = vmatpush1.bf16.msra.mxu0 %v1005
        %1012 = vmatprep.subr.bf16.mxu0 0
        %1013 = vmatpush1.bf16.msra.mxu0 0
        %1014 = vmatprep.subr.bf16.mxu0 0
        %1015 = vmatpush1.bf16.msra.mxu0 0
        %1016 = vmatprep.subr.bf16.mxu0 0
        %1017 = vmatpush1.bf16.msra.mxu0 0
        %1018 = vmatprep.subr.bf16.mxu0 0
        %1019 = vmatpush1.bf16.msra.mxu0 0
        %1020 = vmatprep.subr.bf16.mxu0 0
        %1021 = vmatpush1.bf16.msra.mxu0 0
        %1022 = vmatprep.subr.bf16.mxu0 0
        %1023 = vmatpush1.bf16.msra.mxu0 0
        %1024 = vmatprep.subr.bf16.mxu0 0
        %1025 = vmatpush1.bf16.msra.mxu0 0
        %1026 = vmatprep.subr.bf16.mxu0 0
        %1027 = vmatpush1.bf16.msra.mxu0 0
        %1028 = vmatprep.subr.bf16.mxu0 0
        %1029 = vmatpush1.bf16.msra.mxu0 0
        %1030 = vmatprep.subr.bf16.mxu0 0
        %1031 = vmatpush1.bf16.msra.mxu0 0
        %1032 = vmatprep.subr.bf16.mxu0 0
        %1033 = vmatpush1.bf16.msra.mxu0 0
        %1034 = vmatprep.subr.bf16.mxu0 0
        %1035 = vmatpush1.bf16.msra.mxu0 0
        %1036 = vmatprep.subr.bf16.mxu0 0
        %1037 = vmatpush1.bf16.msra.mxu0 0
        %1038 = vmatprep.subr.bf16.mxu0 0
        %1039 = vmatpush1.bf16.msra.mxu0 0
        %1040 = vmatprep.mubr.bf16.mxu0 0
        %1041 = vmatmul.mubr.bf16.gmra.mrb[0].mxu0 %v859
        %v1042 = vpop.f32.mrb[0].mxu0
        %v1043 = vadd.f32 %v994, %v1042
        %v1044 = vpop.f32.mrb[0].mxu0
        %v1045 = vpop.f32.mrb[0].mxu0
        %v1046 = vadd.f32 %v994, %v1045
        %v1047 = vpop.f32.mrb[0].mxu0
        %1048 = vmatprep.mubr.bf16.mxu0 0
        %1049 = vmatmul.mubr.bf16.gmra.mrb[0].mxu0 %v862
        %v1050 = vpop.f32.mrb[0].mxu0
        %v1051 = vadd.f32 %v994, %v1050
        %v1052 = vpop.f32.mrb[0].mxu0
        %v1053 = vpop.f32.mrb[0].mxu0
        %v1054 = vadd.f32 %v994, %v1053
        %v1055 = vpop.f32.mrb[0].mxu0
        %1056 = vdwg.mxu0
        %v1057 = vmul.f32 %v899, 0.25
        %v1058 = vmul.f32 %v902, 0.25
        %v1059 = vmul.f32 %v907, 0.25
        %v1060 = vmul.f32 %v910, 0.25
        %v1061 = vpack.c.bf16 %v1058, %v1057
        %v1062 = vpack.c.bf16 %v1060, %v1059
        %v1063 = vpack.c.bf16 %v974, %v971
        %v1064 = vpack.c.bf16 %v982, %v979
        %v1065 = vpack.c.bf16 %v1046, %v1043
        %v1066 = vpack.c.bf16 %v1054, %v1051
        %v1067 = vld [vmem:[#allocation17] sm:$0xf]
        %v1068 = vld [vmem:[#allocation17 + $0x4] sm:$0xf]
        %v1069 = vld [vmem:[#allocation17 + $0x8] sm:$0xf]
        %v1070 = vld [vmem:[#allocation17 + $0xc] sm:$0xf]
        %v1071 = vlaneseq
        %v1072 = vshrl.u32 %v1071, 7
        %v1073 = vadd.s32 %v1072, 8
        %v1074 = vadd.s32 %v1072, 16
        %v1075 = vadd.s32 %v1072, 24
        %v1076 = vlaneseq
        %v1077 = vand.u32 %v1076, 127
        %vm1078 = vcmp.le.s32.totalorder %v1077, %v1072
        %vm1079 = vcmp.le.s32.totalorder %v1077, %v1073
        %vm1080 = vcmp.le.s32.totalorder %v1077, %v1074
        %vm1081 = vcmp.le.s32.totalorder %v1077, %v1075
        %vm1082 = vcmask 130048
        %v1084 = vsel %vm1082, %v1061, 0
        %v1087 = vsel %vm1082, %v1062, 0
        %v1090 = vsel %vm1082, %v1063, 0
        %v1093 = vsel %vm1082, %v1064, 0
        %1095 = vmatprep.subr.bf16.mxu0 0
        %1096 = vmatpush1.bf16.xpose.msra.mxu0 %v1090
        %1097 = vmatprep.subr.bf16.mxu0 0
        %1098 = vmatpush1.bf16.xpose.msra.mxu0 %v1093
        %1099 = vmatprep.subr.bf16.mxu0 0
        %1100 = vmatpush1.bf16.xpose.msra.mxu0 0
        %1101 = vmatprep.subr.bf16.mxu0 0
        %1102 = vmatpush1.bf16.xpose.msra.mxu0 0
        %1103 = vmatprep.subr.bf16.mxu0 0
        %1104 = vmatpush1.bf16.xpose.msra.mxu0 0
        %1105 = vmatprep.subr.bf16.mxu0 0
        %1106 = vmatpush1.bf16.xpose.msra.mxu0 0
        %1107 = vmatprep.subr.bf16.mxu0 0
        %1108 = vmatpush1.bf16.xpose.msra.mxu0 0
        %1109 = vmatprep.subr.bf16.mxu0 0
        %1110 = vmatpush1.bf16.xpose.msra.mxu0 0
        %1111 = vmatprep.subr.bf16.mxu0 0
        %1112 = vmatpush1.bf16.xpose.msra.mxu0 0
        %1113 = vmatprep.subr.bf16.mxu0 0
        %1114 = vmatpush1.bf16.xpose.msra.mxu0 0
        %1115 = vmatprep.subr.bf16.mxu0 0
        %1116 = vmatpush1.bf16.xpose.msra.mxu0 0
        %1117 = vmatprep.subr.bf16.mxu0 0
        %1118 = vmatpush1.bf16.xpose.msra.mxu0 0
        %1119 = vmatprep.subr.bf16.mxu0 0
        %1120 = vmatpush1.bf16.xpose.msra.mxu0 0
        %1121 = vmatprep.subr.bf16.mxu0 0
        %1122 = vmatpush1.bf16.xpose.msra.mxu0 0
        %1123 = vmatprep.subr.bf16.mxu0 0
        %1124 = vmatpush1.bf16.xpose.msra.mxu0 0
        %1125 = vmatprep.subr.bf16.mxu0 0
        %1126 = vmatpush1.bf16.xpose.msra.mxu0 0
        %1127 = vmatprep.mubr.bf16.mxu0 0
        %1128 = vmatmul.mubr.bf16.gmra.mrb[0].mxu0 %v1084
        %v1129 = vpop.f32.mrb[0].mxu0
        %v1130 = vadd.f32 0.0, %v1129
        %v1131 = vpop.f32.mrb[0].mxu0
        %v1132 = vpop.f32.mrb[0].mxu0
        %v1133 = vadd.f32 0.0, %v1132
        %v1134 = vpop.f32.mrb[0].mxu0
        %1135 = vmatprep.mubr.bf16.mxu0 0
        %1136 = vmatmul.mubr.bf16.gmra.mrb[0].mxu0 %v1087
        %v1137 = vpop.f32.mrb[0].mxu0
        %v1138 = vadd.f32 0.0, %v1137
        %v1139 = vpop.f32.mrb[0].mxu0
        %v1140 = vpop.f32.mrb[0].mxu0
        %v1141 = vadd.f32 0.0, %v1140
        %v1142 = vpop.f32.mrb[0].mxu0
        %1143 = vdwg.mxu0
        %v1144 = vsel %vm1078, %v1130, -1e+30
        %v1145 = vsel %vm1079, %v1133, -1e+30
        %v1146 = vsel %vm1080, %v1138, -1e+30
        %v1147 = vsel %vm1081, %v1141, -1e+30
        %vm1148 = vcmask 228352
        %v1149 = vsel %vm1148, %v1144, -inf
        %1150 = vmax.xlane.f32.xlu0 %v1149
        %v1151 = vpop.xlane.xlu0 %1150
        %v1152 = vsel %vm1148, %v1145, -inf
        %1153 = vmax.xlane.f32.xlu0 %v1152
        %v1154 = vpop.xlane.xlu0 %1153
        %v1155 = vsel %vm1148, %v1146, -inf
        %1156 = vmax.xlane.f32.xlu0 %v1155
        %v1157 = vpop.xlane.xlu0 %1156
        %vm1158 = vcmask 224256
        %v1159 = vsel %vm1158, %v1147, -inf
        %1160 = vmax.xlane.f32.xlu0 %v1159
        %v1161 = vpop.xlane.xlu0 %1160
        %v1162 = vsub.f32 %v1144, %v1151
        %v1163 = vsub.f32 %v1145, %v1154
        %v1164 = vsub.f32 %v1146, %v1157
        %v1165 = vsub.f32 %v1147, %v1161
        %v1166 = vmul.f32 %v1162, 1.442695
        %v1167 = vpow.pop %v1166
        %v1168 = vmul.f32 %v1163, 1.442695
        %v1169 = vpow.pop %v1168
        %v1170 = vmul.f32 %v1164, 1.442695
        %v1171 = vpow.pop %v1170
        %v1172 = vmul.f32 %v1165, 1.442695
        %v1173 = vpow.pop %v1172
        %v1174 = vsel %vm1148, %v1167, 0.0
        %1175 = vadd.xlane.f32.xlu0 %v1174
        %v1176 = vpop.xlane.xlu0 %1175
        %v1177 = vsel %vm1148, %v1169, 0.0
        %1178 = vadd.xlane.f32.xlu0 %v1177
        %v1179 = vpop.xlane.xlu0 %1178
        %v1180 = vsel %vm1148, %v1171, 0.0
        %1181 = vadd.xlane.f32.xlu0 %v1180
        %v1182 = vpop.xlane.xlu0 %1181
        %v1183 = vsel %vm1158, %v1173, 0.0
        %1184 = vadd.xlane.f32.xlu0 %v1183
        %v1185 = vpop.xlane.xlu0 %1184
        %v1186 = vrcp.pop %v1176
        %v1187 = vrcp.pop %v1179
        %v1188 = vrcp.pop %v1182
        %v1189 = vrcp.pop %v1185
        %v1190 = vmul.f32 %v1167, %v1186
        %v1191 = vmul.f32 %v1169, %v1187
        %v1192 = vmul.f32 %v1171, %v1188
        %v1193 = vmul.f32 %v1173, %v1189
        %v1194 = vpack.c.bf16 %v1191, %v1190
        %v1195 = vpack.c.bf16 %v1193, %v1192
        %v1197 = vsel %vm1148, %v1194, 0
        %v1200 = vsel %vm1148, %v1195, 0
        %vm1202 = vcmask 1045504
        %v1204 = vsel %vm1202, %v1066, 0
        %1206 = vmatprep.subr.bf16.mxu0 0
        %1207 = vmatpush1.bf16.msra.mxu0 %v1065
        %1208 = vmatprep.subr.bf16.mxu0 0
        %1209 = vmatpush1.bf16.msra.mxu0 %v1204
        %1210 = vmatprep.subr.bf16.mxu0 0
        %1211 = vmatpush1.bf16.msra.mxu0 0
        %1212 = vmatprep.subr.bf16.mxu0 0
        %1213 = vmatpush1.bf16.msra.mxu0 0
        %1214 = vmatprep.subr.bf16.mxu0 0
        %1215 = vmatpush1.bf16.msra.mxu0 0
        %1216 = vmatprep.subr.bf16.mxu0 0
        %1217 = vmatpush1.bf16.msra.mxu0 0
        %1218 = vmatprep.subr.bf16.mxu0 0
        %1219 = vmatpush1.bf16.msra.mxu0 0
        %1220 = vmatprep.subr.bf16.mxu0 0
        %1221 = vmatpush1.bf16.msra.mxu0 0
        %1222 = vmatprep.subr.bf16.mxu0 0
        %1223 = vmatpush1.bf16.msra.mxu0 0
        %1224 = vmatprep.subr.bf16.mxu0 0
        %1225 = vmatpush1.bf16.msra.mxu0 0
        %1226 = vmatprep.subr.bf16.mxu0 0
        %1227 = vmatpush1.bf16.msra.mxu0 0
        %1228 = vmatprep.subr.bf16.mxu0 0
        %1229 = vmatpush1.bf16.msra.mxu0 0
        %1230 = vmatprep.subr.bf16.mxu0 0
        %1231 = vmatpush1.bf16.msra.mxu0 0
        %1232 = vmatprep.subr.bf16.mxu0 0
        %1233 = vmatpush1.bf16.msra.mxu0 0
        %1234 = vmatprep.subr.bf16.mxu0 0
        %1235 = vmatpush1.bf16.msra.mxu0 0
        %1236 = vmatprep.subr.bf16.mxu0 0
        %1237 = vmatpush1.bf16.msra.mxu0 0
        %1238 = vmatprep.mubr.bf16.mxu0 0
        %1239 = vmatmul.mubr.bf16.gmra.mrb[0].mxu0 %v1197
        %v1240 = vpop.f32.mrb[0].mxu0
        %v1241 = vadd.f32 0.0, %v1240
        %v1242 = vpop.f32.mrb[0].mxu0
        %v1243 = vpop.f32.mrb[0].mxu0
        %v1244 = vadd.f32 0.0, %v1243
        %v1245 = vpop.f32.mrb[0].mxu0
        %1246 = vmatprep.mubr.bf16.mxu0 0
        %1247 = vmatmul.mubr.bf16.gmra.mrb[0].mxu0 %v1200
        %v1248 = vpop.f32.mrb[0].mxu0
        %v1249 = vadd.f32 0.0, %v1248
        %v1250 = vpop.f32.mrb[0].mxu0
        %v1251 = vpop.f32.mrb[0].mxu0
        %v1252 = vadd.f32 0.0, %v1251
        %v1253 = vpop.f32.mrb[0].mxu0
        %1254 = vdwg.mxu0
        %v1255 = vpack.c.bf16 %v1244, %v1241
        %v1256 = vpack.c.bf16 %v1252, %v1249
        %1259 = vrot.lane.b32.xlu0 %v1061, 112
        %v1260 = vpop.permute.xlu0 %1259
        %1261 = vrot.lane.b32.xlu0 %v1062, 112
        %v1262 = vpop.permute.xlu0 %1261
        %1265 = vrot.lane.b32.xlu0 %v1063, 112
        %v1266 = vpop.permute.xlu0 %1265
        %1267 = vrot.lane.b32.xlu0 %v1064, 112
        %v1268 = vpop.permute.xlu0 %1267
        %v1270 = vsel %vm1082, %v1260, 0
        %v1273 = vsel %vm1082, %v1262, 0
        %v1276 = vsel %vm1082, %v1266, 0
        %v1279 = vsel %vm1082, %v1268, 0
        %1281 = vmatprep.subr.bf16.mxu0 0
        %1282 = vmatpush1.bf16.xpose.msra.mxu0 %v1276
        %1283 = vmatprep.subr.bf16.mxu0 0
        %1284 = vmatpush1.bf16.xpose.msra.mxu0 %v1279
        %1285 = vmatprep.subr.bf16.mxu0 0
        %1286 = vmatpush1.bf16.xpose.msra.mxu0 0
        %1287 = vmatprep.subr.bf16.mxu0 0
        %1288 = vmatpush1.bf16.xpose.msra.mxu0 0
        %1289 = vmatprep.subr.bf16.mxu0 0
        %1290 = vmatpush1.bf16.xpose.msra.mxu0 0
        %1291 = vmatprep.subr.bf16.mxu0 0
        %1292 = vmatpush1.bf16.xpose.msra.mxu0 0
        %1293 = vmatprep.subr.bf16.mxu0 0
        %1294 = vmatpush1.bf16.xpose.msra.mxu0 0
        %1295 = vmatprep.subr.bf16.mxu0 0
        %1296 = vmatpush1.bf16.xpose.msra.mxu0 0
        %1297 = vmatprep.subr.bf16.mxu0 0
        %1298 = vmatpush1.bf16.xpose.msra.mxu0 0
        %1299 = vmatprep.subr.bf16.mxu0 0
        %1300 = vmatpush1.bf16.xpose.msra.mxu0 0
        %1301 = vmatprep.subr.bf16.mxu0 0
        %1302 = vmatpush1.bf16.xpose.msra.mxu0 0
        %1303 = vmatprep.subr.bf16.mxu0 0
        %1304 = vmatpush1.bf16.xpose.msra.mxu0 0
        %1305 = vmatprep.subr.bf16.mxu0 0
        %1306 = vmatpush1.bf16.xpose.msra.mxu0 0
        %1307 = vmatprep.subr.bf16.mxu0 0
        %1308 = vmatpush1.bf16.xpose.msra.mxu0 0
        %1309 = vmatprep.subr.bf16.mxu0 0
        %1310 = vmatpush1.bf16.xpose.msra.mxu0 0
        %1311 = vmatprep.subr.bf16.mxu0 0
        %1312 = vmatpush1.bf16.xpose.msra.mxu0 0
        %1313 = vmatprep.mubr.bf16.mxu0 0
        %1314 = vmatmul.mubr.bf16.gmra.mrb[0].mxu0 %v1270
        %v1315 = vpop.f32.mrb[0].mxu0
        %v1316 = vadd.f32 0.0, %v1315
        %v1317 = vpop.f32.mrb[0].mxu0
        %v1318 = vpop.f32.mrb[0].mxu0
        %v1319 = vadd.f32 0.0, %v1318
        %v1320 = vpop.f32.mrb[0].mxu0
        %1321 = vmatprep.mubr.bf16.mxu0 0
        %1322 = vmatmul.mubr.bf16.gmra.mrb[0].mxu0 %v1273
        %v1323 = vpop.f32.mrb[0].mxu0
        %v1324 = vadd.f32 0.0, %v1323
        %v1325 = vpop.f32.mrb[0].mxu0
        %v1326 = vpop.f32.mrb[0].mxu0
        %v1327 = vadd.f32 0.0, %v1326
        %v1328 = vpop.f32.mrb[0].mxu0
        %1329 = vdwg.mxu0
        %v1330 = vsel %vm1078, %v1316, -1e+30
        %v1331 = vsel %vm1079, %v1319, -1e+30
        %v1332 = vsel %vm1080, %v1324, -1e+30
        %v1333 = vsel %vm1081, %v1327, -1e+30
        %v1334 = vsel %vm1148, %v1330, -inf
        %1335 = vmax.xlane.f32.xlu0 %v1334
        %v1336 = vpop.xlane.xlu0 %1335
        %v1337 = vsel %vm1148, %v1331, -inf
        %1338 = vmax.xlane.f32.xlu0 %v1337
        %v1339 = vpop.xlane.xlu0 %1338
        %v1340 = vsel %vm1148, %v1332, -inf
        %1341 = vmax.xlane.f32.xlu0 %v1340
        %v1342 = vpop.xlane.xlu0 %1341
        %v1343 = vsel %vm1158, %v1333, -inf
        %1344 = vmax.xlane.f32.xlu0 %v1343
        %v1345 = vpop.xlane.xlu0 %1344
        %v1346 = vsub.f32 %v1330, %v1336
        %v1347 = vsub.f32 %v1331, %v1339
        %v1348 = vsub.f32 %v1332, %v1342
        %v1349 = vsub.f32 %v1333, %v1345
        %v1350 = vmul.f32 %v1346, 1.442695
        %v1351 = vpow.pop %v1350
        %v1352 = vmul.f32 %v1347, 1.442695
        %v1353 = vpow.pop %v1352
        %v1354 = vmul.f32 %v1348, 1.442695
        %v1355 = vpow.pop %v1354
        %v1356 = vmul.f32 %v1349, 1.442695
        %v1357 = vpow.pop %v1356
        %v1358 = vsel %vm1148, %v1351, 0.0
        %1359 = vadd.xlane.f32.xlu0 %v1358
        %v1360 = vpop.xlane.xlu0 %1359
        %v1361 = vsel %vm1148, %v1353, 0.0
        %1362 = vadd.xlane.f32.xlu0 %v1361
        %v1363 = vpop.xlane.xlu0 %1362
        %v1364 = vsel %vm1148, %v1355, 0.0
        %1365 = vadd.xlane.f32.xlu0 %v1364
        %v1366 = vpop.xlane.xlu0 %1365
        %v1367 = vsel %vm1158, %v1357, 0.0
        %1368 = vadd.xlane.f32.xlu0 %v1367
        %v1369 = vpop.xlane.xlu0 %1368
        %v1370 = vrcp.pop %v1360
        %v1371 = vrcp.pop %v1363
        %v1372 = vrcp.pop %v1366
        %v1373 = vrcp.pop %v1369
        %v1374 = vmul.f32 %v1351, %v1370
        %v1375 = vmul.f32 %v1353, %v1371
        %v1376 = vmul.f32 %v1355, %v1372
        %v1377 = vmul.f32 %v1357, %v1373
        %v1378 = vpack.c.bf16 %v1375, %v1374
        %v1379 = vpack.c.bf16 %v1377, %v1376
        %1382 = vrot.lane.b32.xlu0 %v1065, 112
        %v1383 = vpop.permute.xlu0 %1382
        %1384 = vrot.lane.b32.xlu0 %v1066, 112
        %v1385 = vpop.permute.xlu0 %1384
        %v1388 = vsel %vm1148, %v1378, 0
        %v1391 = vsel %vm1148, %v1379, 0
        %v1394 = vsel %vm1202, %v1385, 0
        %1396 = vmatprep.subr.bf16.mxu0 0
        %1397 = vmatpush1.bf16.msra.mxu0 %v1383
        %1398 = vmatprep.subr.bf16.mxu0 0
        %1399 = vmatpush1.bf16.msra.mxu0 %v1394
        %1400 = vmatprep.subr.bf16.mxu0 0
        %1401 = vmatpush1.bf16.msra.mxu0 0
        %1402 = vmatprep.subr.bf16.mxu0 0
        %1403 = vmatpush1.bf16.msra.mxu0 0
        %1404 = vmatprep.subr.bf16.mxu0 0
        %1405 = vmatpush1.bf16.msra.mxu0 0
        %1406 = vmatprep.subr.bf16.mxu0 0
        %1407 = vmatpush1.bf16.msra.mxu0 0
        %1408 = vmatprep.subr.bf16.mxu0 0
        %1409 = vmatpush1.bf16.msra.mxu0 0
        %1410 = vmatprep.subr.bf16.mxu0 0
        %1411 = vmatpush1.bf16.msra.mxu0 0
        %1412 = vmatprep.subr.bf16.mxu0 0
        %1413 = vmatpush1.bf16.msra.mxu0 0
        %1414 = vmatprep.subr.bf16.mxu0 0
        %1415 = vmatpush1.bf16.msra.mxu0 0
        %1416 = vmatprep.subr.bf16.mxu0 0
        %1417 = vmatpush1.bf16.msra.mxu0 0
        %1418 = vmatprep.subr.bf16.mxu0 0
        %1419 = vmatpush1.bf16.msra.mxu0 0
        %1420 = vmatprep.subr.bf16.mxu0 0
        %1421 = vmatpush1.bf16.msra.mxu0 0
        %1422 = vmatprep.subr.bf16.mxu0 0
        %1423 = vmatpush1.bf16.msra.mxu0 0
        %1424 = vmatprep.subr.bf16.mxu0 0
        %1425 = vmatpush1.bf16.msra.mxu0 0
        %1426 = vmatprep.subr.bf16.mxu0 0
        %1427 = vmatpush1.bf16.msra.mxu0 0
        %1428 = vmatprep.mubr.bf16.mxu0 0
        %1429 = vmatmul.mubr.bf16.gmra.mrb[0].mxu0 %v1388
        %v1430 = vpop.f32.mrb[0].mxu0
        %v1431 = vadd.f32 0.0, %v1430
        %v1432 = vpop.f32.mrb[0].mxu0
        %v1433 = vpop.f32.mrb[0].mxu0
        %v1434 = vadd.f32 0.0, %v1433
        %v1435 = vpop.f32.mrb[0].mxu0
        %1436 = vmatprep.mubr.bf16.mxu0 0
        %1437 = vmatmul.mubr.bf16.gmra.mrb[0].mxu0 %v1391
        %v1438 = vpop.f32.mrb[0].mxu0
        %v1439 = vadd.f32 0.0, %v1438
        %v1440 = vpop.f32.mrb[0].mxu0
        %v1441 = vpop.f32.mrb[0].mxu0
        %v1442 = vadd.f32 0.0, %v1441
        %v1443 = vpop.f32.mrb[0].mxu0
        %1444 = vdwg.mxu0
        %v1445 = vpack.c.bf16 %v1434, %v1431
        %v1446 = vpack.c.bf16 %v1442, %v1439
        %v1449 = vunpack.c.l.b16 %v1069
        %v1450 = vunpack.c.l.b16 %v1070
        %v1451 = vpack.c.b16 %v1450, %v1449
        %v1454 = vsel %vm1082, %v1445, 0
        %v1457 = vsel %vm1082, %v1446, 0
        %1459 = vmatprep.subr.bf16.mxu0 0
        %1460 = vmatpush1.bf16.msra.mxu0 %v1451
        %1461 = vmatprep.subr.bf16.mxu0 0
        %1462 = vmatpush1.bf16.msra.mxu0 0
        %1463 = vmatprep.subr.bf16.mxu0 0
        %1464 = vmatpush1.bf16.msra.mxu0 0
        %1465 = vmatprep.subr.bf16.mxu0 0
        %1466 = vmatpush1.bf16.msra.mxu0 0
        %1467 = vmatprep.subr.bf16.mxu0 0
        %1468 = vmatpush1.bf16.msra.mxu0 0
        %1469 = vmatprep.subr.bf16.mxu0 0
        %1470 = vmatpush1.bf16.msra.mxu0 0
        %1471 = vmatprep.subr.bf16.mxu0 0
        %1472 = vmatpush1.bf16.msra.mxu0 0
        %1473 = vmatprep.subr.bf16.mxu0 0
        %1474 = vmatpush1.bf16.msra.mxu0 0
        %1475 = vmatprep.subr.bf16.mxu0 0
        %1476 = vmatpush1.bf16.msra.mxu0 0
        %1477 = vmatprep.subr.bf16.mxu0 0
        %1478 = vmatpush1.bf16.msra.mxu0 0
        %1479 = vmatprep.subr.bf16.mxu0 0
        %1480 = vmatpush1.bf16.msra.mxu0 0
        %1481 = vmatprep.subr.bf16.mxu0 0
        %1482 = vmatpush1.bf16.msra.mxu0 0
        %1483 = vmatprep.subr.bf16.mxu0 0
        %1484 = vmatpush1.bf16.msra.mxu0 0
        %1485 = vmatprep.subr.bf16.mxu0 0
        %1486 = vmatpush1.bf16.msra.mxu0 0
        %1487 = vmatprep.subr.bf16.mxu0 0
        %1488 = vmatpush1.bf16.msra.mxu0 0
        %1489 = vmatprep.subr.bf16.mxu0 0
        %1490 = vmatpush1.bf16.msra.mxu0 0
        %1491 = vmatprep.mubr.bf16.mxu0 0
        %1492 = vmatmul.mubr.bf16.gmra.mrb[0].mxu0 %v1454
        %v1493 = vpop.f32.mrb[0].mxu0
        %v1494 = vadd.f32 0.0, %v1493
        %v1495 = vpop.f32.mrb[0].mxu0
        %v1496 = vpop.f32.mrb[0].mxu0
        %v1497 = vadd.f32 0.0, %v1496
        %v1498 = vpop.f32.mrb[0].mxu0
        %1499 = vmatprep.mubr.bf16.mxu0 0
        %1500 = vmatmul.mubr.bf16.gmra.mrb[0].mxu0 %v1457
        %v1501 = vpop.f32.mrb[0].mxu0
        %v1502 = vadd.f32 0.0, %v1501
        %v1503 = vpop.f32.mrb[0].mxu0
        %v1504 = vpop.f32.mrb[0].mxu0
        %v1505 = vadd.f32 0.0, %v1504
        %v1506 = vpop.f32.mrb[0].mxu0
        %1507 = vdwg.mxu0
        %v1510 = vunpack.c.l.b16 %v1067
        %v1511 = vunpack.c.l.b16 %v1068
        %v1512 = vpack.c.b16 %v1511, %v1510
        %v1515 = vsel %vm1082, %v1255, 0
        %v1518 = vsel %vm1082, %v1256, 0
        %1520 = vmatprep.subr.bf16.mxu0 0
        %1521 = vmatpush1.bf16.msra.mxu0 %v1512
        %1522 = vmatprep.subr.bf16.mxu0 0
        %1523 = vmatpush1.bf16.msra.mxu0 0
        %1524 = vmatprep.subr.bf16.mxu0 0
        %1525 = vmatpush1.bf16.msra.mxu0 0
        %1526 = vmatprep.subr.bf16.mxu0 0
        %1527 = vmatpush1.bf16.msra.mxu0 0
        %1528 = vmatprep.subr.bf16.mxu0 0
        %1529 = vmatpush1.bf16.msra.mxu0 0
        %1530 = vmatprep.subr.bf16.mxu0 0
        %1531 = vmatpush1.bf16.msra.mxu0 0
        %1532 = vmatprep.subr.bf16.mxu0 0
        %1533 = vmatpush1.bf16.msra.mxu0 0
        %1534 = vmatprep.subr.bf16.mxu0 0
        %1535 = vmatpush1.bf16.msra.mxu0 0
        %1536 = vmatprep.subr.bf16.mxu0 0
        %1537 = vmatpush1.bf16.msra.mxu0 0
        %1538 = vmatprep.subr.bf16.mxu0 0
        %1539 = vmatpush1.bf16.msra.mxu0 0
        %1540 = vmatprep.subr.bf16.mxu0 0
        %1541 = vmatpush1.bf16.msra.mxu0 0
        %1542 = vmatprep.subr.bf16.mxu0 0
        %1543 = vmatpush1.bf16.msra.mxu0 0
        %1544 = vmatprep.subr.bf16.mxu0 0
        %1545 = vmatpush1.bf16.msra.mxu0 0
        %1546 = vmatprep.subr.bf16.mxu0 0
        %1547 = vmatpush1.bf16.msra.mxu0 0
        %1548 = vmatprep.subr.bf16.mxu0 0
        %1549 = vmatpush1.bf16.msra.mxu0 0
        %1550 = vmatprep.subr.bf16.mxu0 0
        %1551 = vmatpush1.bf16.msra.mxu0 0
        %1552 = vmatprep.mubr.bf16.mxu0 0
        %1553 = vmatmul.mubr.bf16.gmra.mrb[0].mxu0 %v1515
        %v1554 = vpop.f32.mrb[0].mxu0
        %v1555 = vadd.f32 %v1494, %v1554
        %v1556 = vpop.f32.mrb[0].mxu0
        %v1557 = vpop.f32.mrb[0].mxu0
        %v1558 = vadd.f32 %v1497, %v1557
        %v1559 = vpop.f32.mrb[0].mxu0
        %1560 = vmatprep.mubr.bf16.mxu0 0
        %1561 = vmatmul.mubr.bf16.gmra.mrb[0].mxu0 %v1518
        %v1562 = vpop.f32.mrb[0].mxu0
        %v1563 = vadd.f32 %v1502, %v1562
        %v1564 = vpop.f32.mrb[0].mxu0
        %v1565 = vpop.f32.mrb[0].mxu0
        %v1566 = vadd.f32 %v1505, %v1565
        %v1567 = vpop.f32.mrb[0].mxu0
        %1568 = vdwg.mxu0
        %v1569 = vld [vmem:[#allocation18] sm:$0x1]
        %v1571 = vlaneseq
        %v1572 = vshrl.u32 %v1571, 7
        %v1573 = vsub.s32 0, %v1572
        %v1574 = vrot.slane %v1569, %v1573
        %v1576 = vadd.f32 %v1555, %v1574
        %v1577 = vadd.f32 %v1558, %v1574
        %v1578 = vadd.f32 %v1563, %v1574
        %v1579 = vadd.f32 %v1566, %v1574
        %v1580 = vadd.f32 %v829, %v1576
        %v1581 = vadd.f32 %v830, %v1577
        %v1582 = vadd.f32 %v831, %v1578
        %v1583 = vadd.f32 %v832, %v1579
        %v1584 = vld [vmem:[#allocation20] sm:$0x1]
        %v1585 = vld [vmem:[#allocation21] sm:$0x1]
        %v1586 = vsel %vm820, %v1580, 0.0
        %1587 = vadd.xlane.f32.xlu0 %v1586
        %v1588 = vpop.xlane.xlu0 %1587
        %v1589 = vsel %vm820, %v1581, 0.0
        %1590 = vadd.xlane.f32.xlu0 %v1589
        %v1591 = vpop.xlane.xlu0 %1590
        %v1592 = vsel %vm820, %v1582, 0.0
        %1593 = vadd.xlane.f32.xlu0 %v1592
        %v1594 = vpop.xlane.xlu0 %1593
        %v1595 = vsel %vm827, %v1583, 0.0
        %1596 = vadd.xlane.f32.xlu0 %v1595
        %v1597 = vpop.xlane.xlu0 %1596
        %v1598 = vrcp.pop 32.0
        %v1599 = vmul.f32 %v1588, %v1598
        %v1600 = vmul.f32 %v1591, %v1598
        %v1601 = vmul.f32 %v1594, %v1598
        %v1602 = vmul.f32 %v1597, %v1598
        %v1603 = vsub.f32 %v1580, %v1599
        %v1604 = vsub.f32 %v1581, %v1600
        %v1605 = vsub.f32 %v1582, %v1601
        %v1606 = vsub.f32 %v1583, %v1602
        %v1607 = vmul.f32 %v1603, %v1603
        %v1608 = vmul.f32 %v1604, %v1604
        %v1609 = vmul.f32 %v1605, %v1605
        %v1610 = vmul.f32 %v1606, %v1606
        %v1611 = vsel %vm820, %v1607, 0.0
        %1612 = vadd.xlane.f32.xlu0 %v1611
        %v1613 = vpop.xlane.xlu0 %1612
        %v1614 = vsel %vm820, %v1608, 0.0
        %1615 = vadd.xlane.f32.xlu0 %v1614
        %v1616 = vpop.xlane.xlu0 %1615
        %v1617 = vsel %vm820, %v1609, 0.0
        %1618 = vadd.xlane.f32.xlu0 %v1617
        %v1619 = vpop.xlane.xlu0 %1618
        %v1620 = vsel %vm827, %v1610, 0.0
        %1621 = vadd.xlane.f32.xlu0 %v1620
        %v1622 = vpop.xlane.xlu0 %1621
        %v1623 = vmul.f32 %v1613, %v1598
        %v1624 = vmul.f32 %v1616, %v1598
        %v1625 = vmul.f32 %v1619, %v1598
        %v1626 = vmul.f32 %v1622, %v1598
        %v1627 = vadd.f32 %v1623, 1e-05
        %v1628 = vadd.f32 %v1624, 1e-05
        %v1629 = vadd.f32 %v1625, 1e-05
        %v1630 = vadd.f32 %v1626, 1e-05
        %v1631 = vrsqrt.pop %v1627
        %v1632 = vrsqrt.pop %v1628
        %v1633 = vrsqrt.pop %v1629
        %v1634 = vrsqrt.pop %v1630
        %v1635 = vmul.f32 %v1603, %v1631
        %v1636 = vmul.f32 %v1604, %v1632
        %v1637 = vmul.f32 %v1605, %v1633
        %v1638 = vmul.f32 %v1606, %v1634
        %v1640 = vlaneseq
        %v1641 = vshrl.u32 %v1640, 7
        %v1642 = vsub.s32 0, %v1641
        %v1643 = vrot.slane %v1584, %v1642
        %v1645 = vmul.f32 %v1635, %v1643
        %v1646 = vmul.f32 %v1636, %v1643
        %v1647 = vmul.f32 %v1637, %v1643
        %v1648 = vmul.f32 %v1638, %v1643
        %v1650 = vlaneseq
        %v1651 = vshrl.u32 %v1650, 7
        %v1652 = vsub.s32 0, %v1651
        %v1653 = vrot.slane %v1585, %v1652
        %v1655 = vadd.f32 %v1645, %v1653
        %v1656 = vadd.f32 %v1646, %v1653
        %v1657 = vadd.f32 %v1647, %v1653
        %v1658 = vadd.f32 %v1648, %v1653
        %v1659 = vpack.c.bf16 %v1656, %v1655
        %v1660 = vpack.c.bf16 %v1658, %v1657
        %v1661 = vld [vmem:[#allocation23] sm:$0xf]
        %v1662 = vld [vmem:[#allocation23 + $0x4] sm:$0xf]
        %v1663 = vld [vmem:[#allocation23 + $0x8] sm:$0xf]
        %v1664 = vld [vmem:[#allocation23 + $0xc] sm:$0xf]
        %v1665 = vld [vmem:[#allocation24] sm:$0x1]
        %v1667 = vlaneseq
        %v1668 = vshrl.u32 %v1667, 7
        %v1669 = vsub.s32 0, %v1668
        %v1670 = vrot.slane %v1665, %v1669
        %v1676 = vunpack.c.l.b16 %v1661
        %v1677 = vunpack.c.l.b16 %v1662
        %v1678 = vunpack.c.l.b16 %v1663
        %v1679 = vunpack.c.l.b16 %v1664
        %v1680 = vpack.c.b16 %v1677, %v1676
        %v1681 = vpack.c.b16 %v1679, %v1678
        %v1685 = vsel %vm820, %v1659, 0
        %v1688 = vsel %vm820, %v1660, 0
        %1690 = vmatprep.subr.bf16.mxu0 0
        %1691 = vmatpush1.bf16.msra.mxu0 %v1680
        %1692 = vmatprep.subr.bf16.mxu0 0
        %1693 = vmatpush1.bf16.msra.mxu0 %v1681
        %1694 = vmatprep.subr.bf16.mxu0 0
        %1695 = vmatpush1.bf16.msra.mxu0 0
        %1696 = vmatprep.subr.bf16.mxu0 0
        %1697 = vmatpush1.bf16.msra.mxu0 0
        %1698 = vmatprep.subr.bf16.mxu0 0
        %1699 = vmatpush1.bf16.msra.mxu0 0
        %1700 = vmatprep.subr.bf16.mxu0 0
        %1701 = vmatpush1.bf16.msra.mxu0 0
        %1702 = vmatprep.subr.bf16.mxu0 0
        %1703 = vmatpush1.bf16.msra.mxu0 0
        %1704 = vmatprep.subr.bf16.mxu0 0
        %1705 = vmatpush1.bf16.msra.mxu0 0
        %1706 = vmatprep.subr.bf16.mxu0 0
        %1707 = vmatpush1.bf16.msra.mxu0 0
        %1708 = vmatprep.subr.bf16.mxu0 0
        %1709 = vmatpush1.bf16.msra.mxu0 0
        %1710 = vmatprep.subr.bf16.mxu0 0
        %1711 = vmatpush1.bf16.msra.mxu0 0
        %1712 = vmatprep.subr.bf16.mxu0 0
        %1713 = vmatpush1.bf16.msra.mxu0 0
        %1714 = vmatprep.subr.bf16.mxu0 0
        %1715 = vmatpush1.bf16.msra.mxu0 0
        %1716 = vmatprep.subr.bf16.mxu0 0
        %1717 = vmatpush1.bf16.msra.mxu0 0
        %1718 = vmatprep.subr.bf16.mxu0 0
        %1719 = vmatpush1.bf16.msra.mxu0 0
        %1720 = vmatprep.subr.bf16.mxu0 0
        %1721 = vmatpush1.bf16.msra.mxu0 0
        %1722 = vmatprep.mubr.bf16.mxu0 0
        %1723 = vmatmul.mubr.bf16.gmra.mrb[0].mxu0 %v1685
        %v1724 = vpop.f32.mrb[0].mxu0
        %v1725 = vadd.f32 %v1670, %v1724
        %v1726 = vpop.f32.mrb[0].mxu0
        %v1727 = vpop.f32.mrb[0].mxu0
        %v1728 = vadd.f32 %v1670, %v1727
        %v1729 = vpop.f32.mrb[0].mxu0
        %1730 = vmatprep.mubr.bf16.mxu0 0
        %1731 = vmatmul.mubr.bf16.gmra.mrb[0].mxu0 %v1688
        %v1732 = vpop.f32.mrb[0].mxu0
        %v1733 = vadd.f32 %v1670, %v1732
        %v1734 = vpop.f32.mrb[0].mxu0
        %v1735 = vpop.f32.mrb[0].mxu0
        %v1736 = vadd.f32 %v1670, %v1735
        %v1737 = vpop.f32.mrb[0].mxu0
        %1738 = vdwg.mxu0
        %v1739 = vmul.f32 %v1725, 0.5
        %v1740 = vmul.f32 %v1728, 0.5
        %v1741 = vmul.f32 %v1733, 0.5
        %v1742 = vmul.f32 %v1736, 0.5
        %v1743 = vmul.f32 %v1725, 0.70710677
        %v1744 = vmul.f32 %v1728, 0.70710677
        %v1745 = vmul.f32 %v1733, 0.70710677
        %v1746 = vmul.f32 %v1736, 0.70710677
        %v1747 = verf.f32.pop %v1743
        %v1748 = verf.f32.pop %v1744
        %v1749 = verf.f32.pop %v1745
        %v1750 = verf.f32.pop %v1746
        %v1751 = vadd.f32 %v1747, 1.0
        %v1752 = vadd.f32 %v1748, 1.0
        %v1753 = vadd.f32 %v1749, 1.0
        %v1754 = vadd.f32 %v1750, 1.0
        %v1755 = vmul.f32 %v1739, %v1751
        %v1756 = vmul.f32 %v1740, %v1752
        %v1757 = vmul.f32 %v1741, %v1753
        %v1758 = vmul.f32 %v1742, %v1754
        %v1759 = vpack.c.bf16 %v1756, %v1755
        %v1760 = vpack.c.bf16 %v1758, %v1757
        %v1761 = vld [vmem:[#allocation26] sm:$0xf]
        %v1762 = vld [vmem:[#allocation26 + $0x4] sm:$0xf]
        %v1763 = vld [vmem:[#allocation26 + $0x8] sm:$0xf]
        %v1764 = vld [vmem:[#allocation26 + $0xc] sm:$0xf]
        %v1765 = vld [vmem:[#allocation26 + $0x10] sm:$0xf]
        %v1766 = vld [vmem:[#allocation26 + $0x14] sm:$0xf]
        %v1767 = vld [vmem:[#allocation26 + $0x18] sm:$0xf]
        %v1768 = vld [vmem:[#allocation26 + $0x1c] sm:$0xf]
        %v1769 = vld [vmem:[#allocation26 + $0x20] sm:$0xf]
        %v1770 = vld [vmem:[#allocation26 + $0x24] sm:$0xf]
        %v1771 = vld [vmem:[#allocation26 + $0x28] sm:$0xf]
        %v1772 = vld [vmem:[#allocation26 + $0x2c] sm:$0xf]
        %v1773 = vld [vmem:[#allocation26 + $0x30] sm:$0xf]
        %v1774 = vld [vmem:[#allocation26 + $0x34] sm:$0xf]
        %v1775 = vld [vmem:[#allocation26 + $0x38] sm:$0xf]
        %v1776 = vld [vmem:[#allocation26 + $0x3c] sm:$0xf]
        %v1777 = vld [vmem:[#allocation27] sm:$0x1]
        %v1779 = vlaneseq
        %v1780 = vshrl.u32 %v1779, 7
        %v1781 = vsub.s32 0, %v1780
        %v1782 = vrot.slane %v1777, %v1781
        %v1800 = vunpack.c.l.b16 %v1761
        %v1801 = vunpack.c.l.b16 %v1762
        %v1802 = vunpack.c.l.b16 %v1763
        %v1803 = vunpack.c.l.b16 %v1764
        %v1804 = vunpack.c.l.b16 %v1765
        %v1805 = vunpack.c.l.b16 %v1766
        %v1806 = vunpack.c.l.b16 %v1767
        %v1807 = vunpack.c.l.b16 %v1768
        %v1808 = vunpack.c.l.b16 %v1769
        %v1809 = vunpack.c.l.b16 %v1770
        %v1810 = vunpack.c.l.b16 %v1771
        %v1811 = vunpack.c.l.b16 %v1772
        %v1812 = vunpack.c.l.b16 %v1773
        %v1813 = vunpack.c.l.b16 %v1774
        %v1814 = vunpack.c.l.b16 %v1775
        %v1815 = vunpack.c.l.b16 %v1776
        %v1816 = vpack.c.b16 %v1801, %v1800
        %v1817 = vpack.c.b16 %v1803, %v1802
        %v1818 = vpack.c.b16 %v1805, %v1804
        %v1819 = vpack.c.b16 %v1807, %v1806
        %v1820 = vpack.c.b16 %v1809, %v1808
        %v1821 = vpack.c.b16 %v1811, %v1810
        %v1822 = vpack.c.b16 %v1813, %v1812
        %v1823 = vpack.c.b16 %v1815, %v1814
        %1832 = vmatprep.subr.bf16.mxu0 0
        %1833 = vmatpush1.bf16.msra.mxu0 %v1816
        %1834 = vmatprep.subr.bf16.mxu0 0
        %1835 = vmatpush1.bf16.msra.mxu0 %v1817
        %1836 = vmatprep.subr.bf16.mxu0 0
        %1837 = vmatpush1.bf16.msra.mxu0 %v1818
        %1838 = vmatprep.subr.bf16.mxu0 0
        %1839 = vmatpush1.bf16.msra.mxu0 %v1819
        %1840 = vmatprep.subr.bf16.mxu0 0
        %1841 = vmatpush1.bf16.msra.mxu0 %v1820
        %1842 = vmatprep.subr.bf16.mxu0 0
        %1843 = vmatpush1.bf16.msra.mxu0 %v1821
        %1844 = vmatprep.subr.bf16.mxu0 0
        %1845 = vmatpush1.bf16.msra.mxu0 %v1822
        %1846 = vmatprep.subr.bf16.mxu0 0
        %1847 = vmatpush1.bf16.msra.mxu0 %v1823
        %1848 = vmatprep.subr.bf16.mxu0 0
        %1849 = vmatpush1.bf16.msra.mxu0 0
        %1850 = vmatprep.subr.bf16.mxu0 0
        %1851 = vmatpush1.bf16.msra.mxu0 0
        %1852 = vmatprep.subr.bf16.mxu0 0
        %1853 = vmatpush1.bf16.msra.mxu0 0
        %1854 = vmatprep.subr.bf16.mxu0 0
        %1855 = vmatpush1.bf16.msra.mxu0 0
        %1856 = vmatprep.subr.bf16.mxu0 0
        %1857 = vmatpush1.bf16.msra.mxu0 0
        %1858 = vmatprep.subr.bf16.mxu0 0
        %1859 = vmatpush1.bf16.msra.mxu0 0
        %1860 = vmatprep.subr.bf16.mxu0 0
        %1861 = vmatpush1.bf16.msra.mxu0 0
        %1862 = vmatprep.subr.bf16.mxu0 0
        %1863 = vmatpush1.bf16.msra.mxu0 0
        %1864 = vmatprep.mubr.bf16.mxu0 0
        %1865 = vmatmul.mubr.bf16.gmra.mrb[0].mxu0 %v1759
        %v1866 = vpop.f32.mrb[0].mxu0
        %v1867 = vadd.f32 %v1782, %v1866
        %v1868 = vpop.f32.mrb[0].mxu0
        %v1869 = vpop.f32.mrb[0].mxu0
        %v1870 = vpop.f32.mrb[0].mxu0
        %1871 = vmatprep.mubr.bf16.mxu0 0
        %1872 = vmatmul.mubr.bf16.gmra.mrb[0].mxu0 %v1760
        %v1873 = vpop.f32.mrb[0].mxu0
        %v1874 = vpop.f32.mrb[0].mxu0
        %v1875 = vpop.f32.mrb[0].mxu0
        %v1876 = vpop.f32.mrb[0].mxu0
        %1877 = vdwg.mxu0
        %v1878 = vadd.f32 %v1655, %v1867
        %v1879 = vld [vmem:[#allocation29] sm:$0x1]
        %v1880 = vld [vmem:[#allocation30] sm:$0x1]
        %v1881 = vsel %vm820, %v1878, 0.0
        %1882 = vadd.xlane.f32.xlu0 %v1881
        %v1883 = vpop.xlane.xlu0 %1882
        %v1884 = vmul.f32 %v1883, %v1598
        %v1885 = vsub.f32 %v1878, %v1884
        %v1886 = vmul.f32 %v1885, %v1885
        %v1887 = vsel %vm820, %v1886, 0.0
        %1888 = vadd.xlane.f32.xlu0 %v1887
        %v1889 = vpop.xlane.xlu0 %1888
        %v1890 = vmul.f32 %v1889, %v1598
        %v1891 = vadd.f32 %v1890, 1e-05
        %v1892 = vrsqrt.pop %v1891
        %v1893 = vmul.f32 %v1885, %v1892
        %v1895 = vlaneseq
        %v1896 = vshrl.u32 %v1895, 7
        %v1897 = vsub.s32 0, %v1896
        %v1898 = vrot.slane %v1879, %v1897
        %v1900 = vmul.f32 %v1893, %v1898
        %v1902 = vlaneseq
        %v1903 = vshrl.u32 %v1902, 7
        %v1904 = vsub.s32 0, %v1903
        %v1905 = vrot.slane %v1880, %v1904
        %v1907 = vadd.f32 %v1900, %v1905
        %1908 = vst.msk [vmem:[%s817] sm:$0xff] %vm820, %v1907
        %s1909 = sand.u32 %s435, 1
        %s1910 = scalar_lea.sflag [#allocation5], %s1909
        %s1911 = sand.u32 %s435, 1
        %s1912 = smul.addr %s1911, 8
        %s1913 = scalar_lea.vmem [#allocation32], %s1912
        // Predicated region
        $region165: #{tpu_custom_call.1} parent=91 // pred_check
          %p1914 = pneg %p445
        $region166: #{tpu_custom_call.1} parent=91 // pred_check_branch
          %1916 = sbr.rel (%p1914) target = $region168
        $region167: #{tpu_custom_call.1} parent=91 // pred_region
          %s1918 = ssub.s32 128, 128
          %1919 = vsyncadd %s1910, %s1918
          %s1920 = smul.addr %s44, 128
          %s1921 = scalar_lea.hbm %s18, %s1920
          %s1923 = sshll.u32 %s1913, 4
          %s1924 = int_to_ptr.vmem [resolvable:$true] %s1923
          %1926 = dma.vmem_to_hbm [thread:$0]  %s1924, 128, %s1921, %s1910
        $region168: #{tpu_custom_call.1} parent=91 // pred_fallthru
          _
      $region92: #{tpu_custom_call.1} parent=5 // pred_fallthru
        _
      %p1927 = scmp.le.s32.totalorder 2, %s39
      // Predicated region
      $region169: #{tpu_custom_call.1} parent=5 // pred_check
        %p1928 = pneg %p1927
      $region170: #{tpu_custom_call.1} parent=5 // pred_check_branch
        %1930 = sbr.rel (%p1928) target = $region172
      $region171: #{tpu_custom_call.1} parent=5 // pred_region
        %s1931 = ssub.s32 %s39, 2
        // Predicated region
        $region173: #{tpu_custom_call.1} parent=171 // pred_check
          %p1932 = pneg %p451
        $region174: #{tpu_custom_call.1} parent=171 // pred_check_branch
          %1934 = sbr.rel (%p1932) target = $region176
        $region175: #{tpu_custom_call.1} parent=171 // pred_region
          %s1935 = sand.u32 %s436, 1
          %s1936 = scalar_lea.sflag [#allocation5], %s1935
          %s1937 = sand.u32 %s436, 1
          %s1938 = smul.addr %s1937, 8
          %s1939 = scalar_lea.vmem [#allocation32], %s1938
          %1940 = dma.done %s1936, 128
        $region176: #{tpu_custom_call.1} parent=171 // pred_fallthru
          _
      $region172: #{tpu_custom_call.1} parent=5 // pred_fallthru
        _
    $region6: #{tpu_custom_call.1} parent=1 // loop_footer
      %s43 = sadd.s32 1, %s39
    $region7: #{tpu_custom_call.1} parent=1 // loop_footer_branch
      %38 = sbr.rel target = $region3
    $region8: #{tpu_custom_call.1} parent=1 // loop_exit
      _
    %1941 = vsyncpa [#allocation4], 1
    %s1942 = scalar_lea.sflag [#allocation4], 1
    %1943 = vsyncpa %s1942, 1
    %1944 = vsyncpa [#allocation7], 1
    %1945 = vsyncpa [#allocation10], 1
    %1946 = vsyncpa [#allocation13], 1
    %1947 = vsyncpa [#allocation16], 1
    %1948 = vsyncpa [#allocation19], 1
    %1949 = vsyncpa [#allocation22], 1
    %1950 = vsyncpa [#allocation25], 1
    %1951 = vsyncpa [#allocation28], 1
    %1952 = vsyncpa [#allocation31], 1
    %1953 = vsyncpa [#allocation5], 1
    %s1954 = scalar_lea.sflag [#allocation5], 1
    %1955 = vsyncpa %s1954, 1

</llo_original>
